<compile_context>
chip_gen: v7x
topology: tpu7x:2x2x1
jax: 0.10.0
libtpu: 0.0.40
codegen_flags: <defaults>
</compile_context>

<pallas_src>
import functools

import jax
import jax.numpy as jnp
from jax.experimental import pallas as pl
from jax.experimental.pallas import tpu as pltpu

_LANE = 128
_NEG_FILL = -1e30            # padded-vocab-class fill; vanishes under max/exp
_DEFAULT_BLOCK_ROWS = 1024   # review: v7x 1024-2048, v6e 512-1024


def _round_up(x, m):
    return ((x + m - 1) // m) * m


# -----------------------------------------------------------------------------
# Kernels
# -----------------------------------------------------------------------------
def _logits_kernel(idx_ref, table_ref, logits_ref):
    """Embedding lookup only (inference / generation path)."""
    tm = idx_ref.shape[0]
    vp = table_ref.shape[0]                       # table is square (V_pad, V_pad)
    lane_iota = jax.lax.broadcasted_iota(jnp.int32, (tm, vp), 1)
    onehot = (lane_iota == idx_ref[...]).astype(jnp.float32)          # (TM, Vp)
    logits = jnp.dot(onehot, table_ref[...],
                     preferred_element_type=jnp.float32,
                     precision=jax.lax.Precision.HIGHEST)
    logits_ref[...] = logits.astype(logits_ref.dtype)


def _loss_logits_kernel(idx_ref, tgt_ref, table_ref, logits_ref, nll_ref, *,
                        n_tokens):
    """Embedding lookup + logits writeback + masked per-tile NLL partial sum."""
    tm = idx_ref.shape[0]
    vp = table_ref.shape[0]
    lane_iota = jax.lax.broadcasted_iota(jnp.int32, (tm, vp), 1)

    onehot = (lane_iota == idx_ref[...]).astype(jnp.float32)
    logits = jnp.dot(onehot, table_ref[...],
                     preferred_element_type=jnp.float32,
                     precision=jax.lax.Precision.HIGHEST)
    logits_ref[...] = logits.astype(logits_ref.dtype)

    # Padded vocab columns hold -1e30 (set once in prepare_tables), so max/exp
    # ignore them with no extra masking pass.
    m = jnp.max(logits, axis=-1, keepdims=True)                        # (TM, 1)
    lse = jnp.log(jnp.sum(jnp.exp(logits - m), axis=-1, keepdims=True)) + m
    tgt_logit = jnp.sum(jnp.where(lane_iota == tgt_ref[...], logits, 0.0),
                        axis=-1, keepdims=True)                        # (TM, 1)

    # Mask padded token rows in-kernel against the true token count.
    pos = (jax.lax.broadcasted_iota(jnp.int32, (tm, 1), 0)
           + pl.program_id(0) * tm)
    nll = jnp.where(pos < n_tokens, lse - tgt_logit, 0.0)              # (TM, 1)
    nll_ref[0] = jnp.sum(nll, axis=0, keepdims=True)                   # (1, 1)


def _loss_only_kernel(idx_ref, tgt_ref, table_t_ref, nll_ref, *, n_tokens):
    """Training fast path: loss only, no logits HBM writeback.

    idx_ref/tgt_ref are lane-dense (1, 1, TM) blocks (tokens on lanes), and the
    whole softmax/CE runs in transposed space (vocab classes on sublanes), so
    no lane<->sublane relayout of the ids is ever needed.
    table_t_ref is the transposed padded table: table_t[c, v] = table[v, c].
    """
    tm = idx_ref.shape[-1]
    vp = table_t_ref.shape[0]
    ids = idx_ref[0]                               # (1, TM)
    tgt = tgt_ref[0]                               # (1, TM)
    sub_iota = jax.lax.broadcasted_iota(jnp.int32, (vp, tm), 0)

    onehot_t = (sub_iota == ids).astype(jnp.float32)                   # (Vp, TM)
    # logits_t[c, r] = table[idx[r], c]
    logits_t = jnp.dot(table_t_ref[...], onehot_t,
                       preferred_element_type=jnp.float32,
                       precision=jax.lax.Precision.HIGHEST)            # (Vp, TM)

    m = jnp.max(logits_t, axis=0, keepdims=True)                       # (1, TM)
    lse = jnp.log(jnp.sum(jnp.exp(logits_t - m), axis=0, keepdims=True)) + m
    tgt_logit = jnp.sum(jnp.where(sub_iota == tgt, logits_t, 0.0),
                        axis=0, keepdims=True)                         # (1, TM)

    pos = (jax.lax.broadcasted_iota(jnp.int32, (1, tm), 1)
           + pl.program_id(0) * tm)
    nll = jnp.where(pos < n_tokens, lse - tgt_logit, 0.0)              # (1, TM)
    nll_ref[0] = jnp.sum(nll, axis=1, keepdims=True)                   # (1, 1)


# -----------------------------------------------------------------------------
# Wrapper
# -----------------------------------------------------------------------------
def prepare_tables(table, v_pad=None):
    """Pad the (V, V) table to lane-dense (V_pad, V_pad) ONCE; reuse per call.

    Padded logit columns are filled with -1e30 so they vanish under max/exp.
    Also returns the transposed table used by the loss-only fast path.
    """
    v = table.shape[0]
    if v_pad is None:
        v_pad = _round_up(v, _LANE)
    t = jnp.pad(table.astype(jnp.float32), ((0, v_pad - v), (0, v_pad - v)))
    if v_pad > v:
        t = t.at[:, v:].set(_NEG_FILL)
    return {"vocab": v, "table_p": t, "table_t": t.T}


def _pick_tile(n, block_rows):
    if block_rows is None:
        tm = _DEFAULT_BLOCK_ROWS
        if n > _LANE:
            # Keep >= 2 row tiles so both v7x TensorCores get work.
            tm = min(tm, _round_up(pl.cdiv(n, 2), _LANE))
    else:
        tm = block_rows
    tm = max(_LANE, _round_up(tm, _LANE))
    tm = min(tm, max(_LANE, _round_up(n, _LANE)))
    n_pad = _round_up(n, tm)
    return tm, n_pad, n_pad // tm


def bigram_forward(idx, table=None, targets=None, *, block_rows=None,
                   return_logits=True, logits_dtype=jnp.float32,
                   prepared=None):
    """Reproduces BigramLanguageModel.forward.

    idx:      (B, T) int token ids
    table:    (V, V) float embedding table; may be None if `prepared` is given
    targets:  optional (B, T) int token ids
    return_logits: when targets are given and this is False, the kernel never
              writes logits to HBM and only the scalar loss is returned.
    logits_dtype: e.g. jnp.bfloat16 halves logits HBM writeback for generation.

    Returns (logits, loss):
      targets None                     -> ((B, T, V) logits, None)
      targets given, return_logits     -> ((B*T, V) logits, scalar loss)
      targets given, not return_logits -> (None, scalar loss)
    """
    B, T = idx.shape
    N = B * T
    if prepared is None:
        prepared = prepare_tables(table)
    V = prepared["vocab"]
    table_p = prepared["table_p"]
    v_pad = table_p.shape[0]

    tm, n_pad, num_tiles = _pick_tile(N, block_rows)
    grid = (num_tiles,)
    cparams = pltpu.CompilerParams(dimension_semantics=("parallel",))

    table_spec = pl.BlockSpec((v_pad, v_pad), lambda i: (0, 0))  # VMEM-resident
    nll_spec = pl.BlockSpec((1, 1, 1), lambda i: (i, 0, 0))
    nll_shape = jax.ShapeDtypeStruct((num_tiles, 1, 1), jnp.float32)

    idx_flat = jnp.pad(idx.reshape(N).astype(jnp.int32), (0, n_pad - N))

    # ---- training fast path: loss only, no logits HBM writeback -------------
    if targets is not None and not return_logits:
        tgt_flat = jnp.pad(targets.reshape(N).astype(jnp.int32), (0, n_pad - N))
        lane_spec = pl.BlockSpec((1, 1, tm), lambda i: (i, 0, 0))
        nll_parts = pl.pallas_call(
            functools.partial(_loss_only_kernel, n_tokens=N),
            grid=grid,
            in_specs=[lane_spec, lane_spec, table_spec],
            out_specs=nll_spec,
            out_shape=nll_shape,
            compiler_params=cparams,
        )(idx_flat.reshape(num_tiles, 1, tm),
          tgt_flat.reshape(num_tiles, 1, tm),
          prepared["table_t"])
        return None, jnp.sum(nll_parts) / N

    # ---- logits-producing paths ----------------------------------------------
    # TODO(synk): idx/tgt column blocks lane-pad their VMEM buffers; switch to
    # (1, TM) lane blocks + in-kernel relayout if row tiles grow beyond ~2K.
    idx_col = idx_flat.reshape(n_pad, 1)
    col_spec = pl.BlockSpec((tm, 1), lambda i: (i, 0))
    logits_spec = pl.BlockSpec((tm, v_pad), lambda i: (i, 0))
    logits_shape = jax.ShapeDtypeStruct((n_pad, v_pad), logits_dtype)

    if targets is None:
        logits_p = pl.pallas_call(
            _logits_kernel,
            grid=grid,
            in_specs=[col_spec, table_spec],
            out_specs=logits_spec,
            out_shape=logits_shape,
            compiler_params=cparams,
        )(idx_col, table_p)
        # TODO(synk): this slice re-copies the logits in XLA; callers able to
        # consume padded (n_pad, 128) logits (or fuse the next op) should skip it.
        return logits_p[:N, :V].reshape(B, T, V), None

    tgt_col = jnp.pad(targets.reshape(N).astype(jnp.int32),
                      (0, n_pad - N)).reshape(n_pad, 1)
    logits_p, nll_parts = pl.pallas_call(
        functools.partial(_loss_logits_kernel, n_tokens=N),
        grid=grid,
        in_specs=[col_spec, col_spec, table_spec],
        out_specs=(logits_spec, nll_spec),
        out_shape=(logits_shape, nll_shape),
        compiler_params=cparams,
    )(idx_col, tgt_col, table_p)
    loss = jnp.sum(nll_parts) / N
    return logits_p[:N, :V], loss


if __name__ == "__main__":
    vocab_size = 65   # tiny-Shakespeare character vocabulary
    key = jax.random.PRNGKey(0)
    k_tab, k_idx, k_tgt, k_idx2, k_tgt2 = jax.random.split(key, 5)

    # nn.Embedding default init ~ N(0, 1)
    table = jax.random.normal(k_tab, (vocab_size, vocab_size), dtype=jnp.float32)

    def ref_forward(idx, targets):
        logits = table[idx.reshape(-1)]
        lse = jax.scipy.special.logsumexp(logits, axis=-1)
        nll = lse - logits[jnp.arange(logits.shape[0]), targets.reshape(-1)]
        return logits, jnp.mean(nll)

    # --- small shape matching the module demo: B=2, T=8 -----------------------
    B, T = 2, 8
    idx = jax.random.randint(k_idx, (B, T), 0, vocab_size, dtype=jnp.int32)
    targets = jax.random.randint(k_tgt, (B, T), 0, vocab_size, dtype=jnp.int32)
    ref_logits, ref_loss = ref_forward(idx, targets)

    # Faithful training path (logits + loss).
    logits, loss = bigram_forward(idx, table, targets)
    jax.block_until_ready(loss)
    assert logits.shape == (B * T, vocab_size)
    assert jnp.allclose(logits, ref_logits, atol=1e-5)
    assert jnp.allclose(loss, ref_loss, atol=1e-5)

    # Fast training path: loss only, no logits HBM writeback; reuses padded table.
    prepared = prepare_tables(table)
    none_logits, loss_fast = bigram_forward(idx, None, targets,
                                            prepared=prepared,
                                            return_logits=False)
    jax.block_until_ready(loss_fast)
    assert none_logits is None
    assert jnp.allclose(loss_fast, ref_loss, atol=1e-5)

    # Inference/generation path (targets=None), f32 and bf16 logits.
    logits_inf, loss_inf = bigram_forward(idx, None, None, prepared=prepared)
    jax.block_until_ready(logits_inf)
    assert loss_inf is None and logits_inf.shape == (B, T, vocab_size)
    assert jnp.allclose(logits_inf.reshape(B * T, vocab_size), ref_logits,
                        atol=1e-5)

    logits_bf16, _ = bigram_forward(idx, None, None, prepared=prepared,
                                    logits_dtype=jnp.bfloat16)
    jax.block_until_ready(logits_bf16)
    assert logits_bf16.dtype == jnp.bfloat16
    assert jnp.allclose(logits_bf16.astype(jnp.float32).reshape(-1, vocab_size),
                        ref_logits, atol=5e-2)

    # --- larger shape: multi-tile grid + in-kernel padded-row masking ---------
    B2, T2 = 3, 100                       # N=300 -> 2 tiles of 256 rows, 212 padded
    idx2 = jax.random.randint(k_idx2, (B2, T2), 0, vocab_size, dtype=jnp.int32)
    targets2 = jax.random.randint(k_tgt2, (B2, T2), 0, vocab_size,
                                  dtype=jnp.int32)
    ref_logits2, ref_loss2 = ref_forward(idx2, targets2)

    logits2, loss2 = bigram_forward(idx2, table, targets2)
    jax.block_until_ready(loss2)
    assert logits2.shape == (B2 * T2, vocab_size)
    assert jnp.allclose(logits2, ref_logits2, atol=1e-5)
    assert jnp.allclose(loss2, ref_loss2, atol=1e-5)

    _, loss2_fast = bigram_forward(idx2, table, targets2,
                                   return_logits=False, block_rows=128)  # 3 tiles
    jax.block_until_ready(loss2_fast)
    assert jnp.allclose(loss2_fast, ref_loss2, atol=1e-5)

    print("KERNEL_OK")
</pallas_src>

<mosaic_0001>
module attributes {stable_mosaic.version = 11 : i64} {
  func.func @_loss_logits_kernel(%arg0: i32, %arg1: memref<128x1xi32, #tpu.memory_space<vmem>>, %arg2: memref<128x1xi32, #tpu.memory_space<vmem>>, %arg3: memref<128x128xf32, #tpu.memory_space<vmem>>, %arg4: memref<128x128xf32, #tpu.memory_space<vmem>>, %arg5: memref<1x1x1xf32, #tpu.memory_space<vmem>>) attributes {dimension_semantics = [#tpu.dimension_semantics<parallel>], iteration_bounds = array<i64: 1>, scalar_prefetch = 0 : i64, scratch_operands = 0 : i64, tpu.core_type = #tpu.core_type<tc>, window_params = [{transform_indices = @transform_0, window_bounds = array<i64: 128, 1>}, {transform_indices = @transform_1, window_bounds = array<i64: 128, 1>}, {pipeline_mode = #tpu.pipeline_mode<synchronous>, transform_indices = @transform_2, window_bounds = array<i64: 128, 128>}, {transform_indices = @transform_3, window_bounds = array<i64: 128, 128>}, {transform_indices = @transform_4, window_bounds = array<i64: 1, 1, 1>}]} {
    %0 = tpu.iota {dimensions = array<i32: 1>} : vector<128x128xi32>
    %c0 = arith.constant 0 : index
    %c0_0 = arith.constant 0 : index
    %1 = vector.load %arg1[%c0, %c0_0] : memref<128x1xi32, #tpu.memory_space<vmem>>, vector<128x1xi32>
    %2 = vector.broadcast %1 : vector<128x1xi32> to vector<128x128xi32>
    %3 = arith.cmpi eq, %0, %2 : vector<128x128xi32>
    %4 = arith.extui %3 : vector<128x128xi1> to vector<128x128xi32>
    %5 = arith.sitofp %4 : vector<128x128xi32> to vector<128x128xf32>
    %c0_1 = arith.constant 0 : index
    %c0_2 = arith.constant 0 : index
    %6 = vector.load %arg3[%c0_1, %c0_2] : memref<128x128xf32, #tpu.memory_space<vmem>>, vector<128x128xf32>
    %cst = arith.constant dense<0.000000e+00> : vector<128x128xf32>
    %7 = tpu.matmul %5, %6, %cst {dimension_numbers = #tpu.dot_dimension_numbers<[1], [0], [0], [1], [0, 0, 1, 1], [], []>, precision = #tpu.contract_precision<fp32>} : vector<128x128xf32>, vector<128x128xf32>, vector<128x128xf32> -> vector<128x128xf32>
    %c0_3 = arith.constant 0 : index
    %c0_4 = arith.constant 0 : index
    %8 = vector.load %arg4[%c0_3, %c0_4] : memref<128x128xf32, #tpu.memory_space<vmem>>, vector<128x128xf32>
    tpu.vector_store %arg4[%c0_3, %c0_4], %7 {strides = array<i32>} : memref<128x128xf32, #tpu.memory_space<vmem>>, vector<128x128xf32>,
    %cst_5 = arith.constant dense<0xFF800000> : vector<128xf32>
    %9 = vector.multi_reduction <maximumf>, %7, %cst_5 [1] : vector<128x128xf32> to vector<128xf32>
    %10 = vector.shape_cast %9 : vector<128xf32> to vector<128x1xf32>
    %11 = vector.broadcast %10 : vector<128x1xf32> to vector<128x128xf32>
    %12 = arith.subf %7, %11 : vector<128x128xf32>
    %13 = math.exp %12 : vector<128x128xf32>
    %cst_6 = arith.constant dense<0.000000e+00> : vector<128xf32>
    %14 = vector.multi_reduction <add>, %13, %cst_6 [1] : vector<128x128xf32> to vector<128xf32>
    %15 = vector.shape_cast %14 : vector<128xf32> to vector<128x1xf32>
    %16 = math.log %15 : vector<128x1xf32>
    %17 = arith.addf %16, %10 : vector<128x1xf32>
    %c0_7 = arith.constant 0 : index
    %c0_8 = arith.constant 0 : index
    %18 = vector.load %arg2[%c0_7, %c0_8] : memref<128x1xi32, #tpu.memory_space<vmem>>, vector<128x1xi32>
    %19 = vector.broadcast %18 : vector<128x1xi32> to vector<128x128xi32>
    %20 = arith.cmpi eq, %0, %19 : vector<128x128xi32>
    %cst_9 = arith.constant 0.000000e+00 : f32
    %21 = vector.broadcast %cst_9 : f32 to vector<128x128xf32>
    %22 = arith.select %20, %7, %21 : vector<128x128xi1>, vector<128x128xf32>
    %cst_10 = arith.constant dense<0.000000e+00> : vector<128xf32>
    %23 = vector.multi_reduction <add>, %22, %cst_10 [1] : vector<128x128xf32> to vector<128xf32>
    %24 = vector.shape_cast %23 : vector<128xf32> to vector<128x1xf32>
    %25 = tpu.iota {dimensions = array<i32: 0>} : vector<128x1xi32>
    %c128_i32 = arith.constant 128 : i32
    %26 = arith.muli %arg0, %c128_i32 : i32
    %27 = vector.broadcast %26 : i32 to vector<128x1xi32>
    %28 = arith.addi %25, %27 : vector<128x1xi32>
    %c16_i32 = arith.constant 16 : i32
    %29 = vector.broadcast %c16_i32 : i32 to vector<128x1xi32>
    %30 = arith.cmpi slt, %28, %29 : vector<128x1xi32>
    %31 = arith.subf %17, %24 : vector<128x1xf32>
    %cst_11 = arith.constant 0.000000e+00 : f32
    %32 = vector.broadcast %cst_11 : f32 to vector<128x1xf32>
    %33 = arith.select %30, %31, %32 : vector<128x1xi1>, vector<128x1xf32>
    %cst_12 = arith.constant dense<0.000000e+00> : vector<1xf32>
    %34 = vector.multi_reduction <add>, %33, %cst_12 [0] : vector<128x1xf32> to vector<1xf32>
    %35 = vector.shape_cast %34 : vector<1xf32> to vector<1x1xf32>
    %c0_13 = arith.constant 0 : index
    %c0_14 = arith.constant 0 : index
    %c0_15 = arith.constant 0 : index
    %36 = vector.load %arg5[%c0_13, %c0_14, %c0_15] : memref<1x1x1xf32, #tpu.memory_space<vmem>>, vector<1x1x1xf32>
    %37 = vector.shape_cast %36 : vector<1x1x1xf32> to vector<1x1xf32>
    %38 = vector.shape_cast %35 : vector<1x1xf32> to vector<1x1x1xf32>
    tpu.vector_store %arg5[%c0_13, %c0_14, %c0_15], %38 {strides = array<i32>} : memref<1x1x1xf32, #tpu.memory_space<vmem>>, vector<1x1x1xf32>,
    return
  }
  func.func @transform_0(%arg0: i32) -> (i32, i32) {
    %c0_i32 = arith.constant 0 : i32
    %c0_i32_0 = arith.constant 0 : i32
    return %arg0, %c0_i32 : i32, i32
  }
  func.func @transform_1(%arg0: i32) -> (i32, i32) {
    %c0_i32 = arith.constant 0 : i32
    %c0_i32_0 = arith.constant 0 : i32
    return %arg0, %c0_i32 : i32, i32
  }
  func.func @transform_2(%arg0: i32) -> (i32, i32) {
    %c0_i32 = arith.constant 0 : i32
    %c0_i32_0 = arith.constant 0 : i32
    %c0_i32_1 = arith.constant 0 : i32
    return %c0_i32, %c0_i32_0 : i32, i32
  }
  func.func @transform_3(%arg0: i32) -> (i32, i32) {
    %c0_i32 = arith.constant 0 : i32
    %c0_i32_0 = arith.constant 0 : i32
    return %arg0, %c0_i32 : i32, i32
  }
  func.func @transform_4(%arg0: i32) -> (i32, i32, i32) {
    %c0_i32 = arith.constant 0 : i32
    %c0_i32_0 = arith.constant 0 : i32
    %c0_i32_1 = arith.constant 0 : i32
    return %arg0, %c0_i32, %c0_i32_0 : i32, i32, i32
  }
}

</mosaic_0001>

<llo_original>
// kernel: tpu_custom_call.1
$region0: #{tpu_custom_call.1}
  #allocation0 [shape = 'u32[]', space=smem, size = 0x4, offset = 0x4, fixed_abs, tag = 'smem constant byte address 0x4 - core index']
  #allocation1 [shape = 'u32[144,128]{1,0:T(1,128)}', space=vmem, size = 0x12000, scoped, tag = 'internal scratch']
  %s0 = inlined_call_operand.vmem [shape: s32[128,1], index: 0, kind: input, shape index: {}]
  %s1 = inlined_call_operand.vmem [shape: s32[128,1], index: 1, kind: input, shape index: {}]
  %s2 = inlined_call_operand.vmem [shape: f32[128,128], index: 2, kind: input, shape index: {}]
  %s3 = inlined_call_operand.hbm [shape: f32[128,128], index: 3, kind: output, shape index: {0}]
  %s4 = inlined_call_operand.hbm [shape: f32[1,1,1], index: 4, kind: output, shape index: {1}]
  %5 = xla_tuple %s3, %s4
  %s6 = sld [smem:[#allocation0]]
  $region30: #{tpu_custom_call.1} parent=0
    _
  %s8 = ssub.s32 1, %s6
  %s9 = scalar_select 0, %s8, %s6
  $region1: #{tpu_custom_call.1} parent=0
    #allocation2 [shape = 'u8[65536]{0}', space=vmem, size = 0x10000, scoped, tag = 'output window, operand 0, single buffered']
    #allocation3 [shape = 's32[1]{0}', space=sflag, size = 0x4, scoped, tag = 'scoped memory for tpu_custom_call.1']
    #allocation4 [shape = 'u8[512]{0}', space=vmem, size = 0x400, scoped, tag = 'output window, operand 1, single buffered']
    #allocation5 [shape = 's32[1]{0}', space=sflag, size = 0x4, scoped, tag = 'scoped memory for tpu_custom_call.1']
    %10 = vsyncpa [#allocation3], 0
    %11 = vsyncpa [#allocation5], 0
    // Predicated region
    $region2: #{tpu_custom_call.1} parent=1 // pred_check
      _
    $region3: #{tpu_custom_call.1} parent=1 // pred_check_branch
      %13 = sbr.rel (0) target = $region5
    $region4: #{tpu_custom_call.1} parent=1 // pred_region
      _
    $region5: #{tpu_custom_call.1} parent=1 // pred_fallthru
      _
    // Predicated region
    $region6: #{tpu_custom_call.1} parent=1 // pred_check
      _
    $region7: #{tpu_custom_call.1} parent=1 // pred_check_branch
      %15 = sbr.rel (0) target = $region9
    $region8: #{tpu_custom_call.1} parent=1 // pred_region
      _
    $region9: #{tpu_custom_call.1} parent=1 // pred_fallthru
      _
    // Predicated region
    $region10: #{tpu_custom_call.1} parent=1 // pred_check
      _
    $region11: #{tpu_custom_call.1} parent=1 // pred_check_branch
      %17 = sbr.rel (0) target = $region13
    $region12: #{tpu_custom_call.1} parent=1 // pred_region
      _
    $region13: #{tpu_custom_call.1} parent=1 // pred_fallthru
      _
    %v18 = vlaneseq
    %v19 = vand.u32 %v18, 127
    %v20 = vld [vmem:[%s0] sm:$0xff]
    %v21 = vld [vmem:[%s0 + $0x8] sm:$0xff]
    %v22 = vld [vmem:[%s0 + $0x10] sm:$0xff]
    %v23 = vld [vmem:[%s0 + $0x18] sm:$0xff]
    %v24 = vld [vmem:[%s0 + $0x20] sm:$0xff]
    %v25 = vld [vmem:[%s0 + $0x28] sm:$0xff]
    %v26 = vld [vmem:[%s0 + $0x30] sm:$0xff]
    %v27 = vld [vmem:[%s0 + $0x38] sm:$0xff]
    %v28 = vld [vmem:[%s0 + $0x40] sm:$0xff]
    %v29 = vld [vmem:[%s0 + $0x48] sm:$0xff]
    %v30 = vld [vmem:[%s0 + $0x50] sm:$0xff]
    %v31 = vld [vmem:[%s0 + $0x58] sm:$0xff]
    %v32 = vld [vmem:[%s0 + $0x60] sm:$0xff]
    %v33 = vld [vmem:[%s0 + $0x68] sm:$0xff]
    %v34 = vld [vmem:[%s0 + $0x70] sm:$0xff]
    %v35 = vld [vmem:[%s0 + $0x78] sm:$0xff]
    %36 = vset.pattern.permute.xlu0 0
    %37 = vperm.xlu0 %36, %v20
    %v38 = vpop.permute.xlu0 %37
    %39 = vset.pattern.permute.xlu0 0
    %40 = vperm.xlu0 %39, %v21
    %v41 = vpop.permute.xlu0 %40
    %42 = vset.pattern.permute.xlu0 0
    %43 = vperm.xlu0 %42, %v22
    %v44 = vpop.permute.xlu0 %43
    %45 = vset.pattern.permute.xlu0 0
    %46 = vperm.xlu0 %45, %v23
    %v47 = vpop.permute.xlu0 %46
    %48 = vset.pattern.permute.xlu0 0
    %49 = vperm.xlu0 %48, %v24
    %v50 = vpop.permute.xlu0 %49
    %51 = vset.pattern.permute.xlu0 0
    %52 = vperm.xlu0 %51, %v25
    %v53 = vpop.permute.xlu0 %52
    %54 = vset.pattern.permute.xlu0 0
    %55 = vperm.xlu0 %54, %v26
    %v56 = vpop.permute.xlu0 %55
    %57 = vset.pattern.permute.xlu0 0
    %58 = vperm.xlu0 %57, %v27
    %v59 = vpop.permute.xlu0 %58
    %60 = vset.pattern.permute.xlu0 0
    %61 = vperm.xlu0 %60, %v28
    %v62 = vpop.permute.xlu0 %61
    %63 = vset.pattern.permute.xlu0 0
    %64 = vperm.xlu0 %63, %v29
    %v65 = vpop.permute.xlu0 %64
    %66 = vset.pattern.permute.xlu0 0
    %67 = vperm.xlu0 %66, %v30
    %v68 = vpop.permute.xlu0 %67
    %69 = vset.pattern.permute.xlu0 0
    %70 = vperm.xlu0 %69, %v31
    %v71 = vpop.permute.xlu0 %70
    %72 = vset.pattern.permute.xlu0 0
    %73 = vperm.xlu0 %72, %v32
    %v74 = vpop.permute.xlu0 %73
    %75 = vset.pattern.permute.xlu0 0
    %76 = vperm.xlu0 %75, %v33
    %v77 = vpop.permute.xlu0 %76
    %78 = vset.pattern.permute.xlu0 0
    %79 = vperm.xlu0 %78, %v34
    %v80 = vpop.permute.xlu0 %79
    %81 = vset.pattern.permute.xlu0 0
    %82 = vperm.xlu0 %81, %v35
    %v83 = vpop.permute.xlu0 %82
    %vm84 = vcmp.eq.s32.totalorder %v19, %v38
    %vm85 = vcmp.eq.s32.totalorder %v19, %v41
    %vm86 = vcmp.eq.s32.totalorder %v19, %v44
    %vm87 = vcmp.eq.s32.totalorder %v19, %v47
    %vm88 = vcmp.eq.s32.totalorder %v19, %v50
    %vm89 = vcmp.eq.s32.totalorder %v19, %v53
    %vm90 = vcmp.eq.s32.totalorder %v19, %v56
    %vm91 = vcmp.eq.s32.totalorder %v19, %v59
    %vm92 = vcmp.eq.s32.totalorder %v19, %v62
    %vm93 = vcmp.eq.s32.totalorder %v19, %v65
    %vm94 = vcmp.eq.s32.totalorder %v19, %v68
    %vm95 = vcmp.eq.s32.totalorder %v19, %v71
    %vm96 = vcmp.eq.s32.totalorder %v19, %v74
    %vm97 = vcmp.eq.s32.totalorder %v19, %v77
    %vm98 = vcmp.eq.s32.totalorder %v19, %v80
    %vm99 = vcmp.eq.s32.totalorder %v19, %v83
    %v100 = vsel %vm84, 1, 0
    %v101 = vsel %vm85, 1, 0
    %v102 = vsel %vm86, 1, 0
    %v103 = vsel %vm87, 1, 0
    %v104 = vsel %vm88, 1, 0
    %v105 = vsel %vm89, 1, 0
    %v106 = vsel %vm90, 1, 0
    %v107 = vsel %vm91, 1, 0
    %v108 = vsel %vm92, 1, 0
    %v109 = vsel %vm93, 1, 0
    %v110 = vsel %vm94, 1, 0
    %v111 = vsel %vm95, 1, 0
    %v112 = vsel %vm96, 1, 0
    %v113 = vsel %vm97, 1, 0
    %v114 = vsel %vm98, 1, 0
    %v115 = vsel %vm99, 1, 0
    %v116 = vcvt.s32.f32 %v100
    %v117 = vcvt.s32.f32 %v101
    %v118 = vcvt.s32.f32 %v102
    %v119 = vcvt.s32.f32 %v103
    %v120 = vcvt.s32.f32 %v104
    %v121 = vcvt.s32.f32 %v105
    %v122 = vcvt.s32.f32 %v106
    %v123 = vcvt.s32.f32 %v107
    %v124 = vcvt.s32.f32 %v108
    %v125 = vcvt.s32.f32 %v109
    %v126 = vcvt.s32.f32 %v110
    %v127 = vcvt.s32.f32 %v111
    %v128 = vcvt.s32.f32 %v112
    %v129 = vcvt.s32.f32 %v113
    %v130 = vcvt.s32.f32 %v114
    %v131 = vcvt.s32.f32 %v115
    %v132 = vld [vmem:[%s2] sm:$0xff]
    %v133 = vld [vmem:[%s2 + $0x8] sm:$0xff]
    %v134 = vld [vmem:[%s2 + $0x10] sm:$0xff]
    %v135 = vld [vmem:[%s2 + $0x18] sm:$0xff]
    %v136 = vld [vmem:[%s2 + $0x20] sm:$0xff]
    %v137 = vld [vmem:[%s2 + $0x28] sm:$0xff]
    %v138 = vld [vmem:[%s2 + $0x30] sm:$0xff]
    %v139 = vld [vmem:[%s2 + $0x38] sm:$0xff]
    %v140 = vld [vmem:[%s2 + $0x40] sm:$0xff]
    %v141 = vld [vmem:[%s2 + $0x48] sm:$0xff]
    %v142 = vld [vmem:[%s2 + $0x50] sm:$0xff]
    %v143 = vld [vmem:[%s2 + $0x58] sm:$0xff]
    %v144 = vld [vmem:[%s2 + $0x60] sm:$0xff]
    %v145 = vld [vmem:[%s2 + $0x68] sm:$0xff]
    %v146 = vld [vmem:[%s2 + $0x70] sm:$0xff]
    %v147 = vld [vmem:[%s2 + $0x78] sm:$0xff]
    %148 = vmatprep.subr.mxu0 0.0
    %v149 = vand.u32 %v132, 4294901760
    %150 = vmatpush1.msra.mxu0 %v149
    %151 = vmatprep.subr.mxu0 0.0
    %v152 = vand.u32 %v133, 4294901760
    %153 = vmatpush1.msra.mxu0 %v152
    %154 = vmatprep.subr.mxu0 0.0
    %v155 = vand.u32 %v134, 4294901760
    %156 = vmatpush1.msra.mxu0 %v155
    %157 = vmatprep.subr.mxu0 0.0
    %v158 = vand.u32 %v135, 4294901760
    %159 = vmatpush1.msra.mxu0 %v158
    %160 = vmatprep.subr.mxu0 0.0
    %v161 = vand.u32 %v136, 4294901760
    %162 = vmatpush1.msra.mxu0 %v161
    %163 = vmatprep.subr.mxu0 0.0
    %v164 = vand.u32 %v137, 4294901760
    %165 = vmatpush1.msra.mxu0 %v164
    %166 = vmatprep.subr.mxu0 0.0
    %v167 = vand.u32 %v138, 4294901760
    %168 = vmatpush1.msra.mxu0 %v167
    %169 = vmatprep.subr.mxu0 0.0
    %v170 = vand.u32 %v139, 4294901760
    %171 = vmatpush1.msra.mxu0 %v170
    %172 = vmatprep.subr.mxu0 0.0
    %v173 = vand.u32 %v140, 4294901760
    %174 = vmatpush1.msra.mxu0 %v173
    %175 = vmatprep.subr.mxu0 0.0
    %v176 = vand.u32 %v141, 4294901760
    %177 = vmatpush1.msra.mxu0 %v176
    %178 = vmatprep.subr.mxu0 0.0
    %v179 = vand.u32 %v142, 4294901760
    %180 = vmatpush1.msra.mxu0 %v179
    %181 = vmatprep.subr.mxu0 0.0
    %v182 = vand.u32 %v143, 4294901760
    %183 = vmatpush1.msra.mxu0 %v182
    %184 = vmatprep.subr.mxu0 0.0
    %v185 = vand.u32 %v144, 4294901760
    %186 = vmatpush1.msra.mxu0 %v185
    %187 = vmatprep.subr.mxu0 0.0
    %v188 = vand.u32 %v145, 4294901760
    %189 = vmatpush1.msra.mxu0 %v188
    %190 = vmatprep.subr.mxu0 0.0
    %v191 = vand.u32 %v146, 4294901760
    %192 = vmatpush1.msra.mxu0 %v191
    %193 = vmatprep.subr.mxu0 0.0
    %v194 = vand.u32 %v147, 4294901760
    %195 = vmatpush1.msra.mxu0 %v194
    %196 = vmatprep.subr.mxu0 0.0
    %197 = vmatpush1.msra.mxu0 0.0
    %198 = vmatprep.subr.mxu0 0.0
    %199 = vmatpush1.msra.mxu0 0.0
    %200 = vmatprep.subr.mxu0 0.0
    %201 = vmatpush1.msra.mxu0 0.0
    %202 = vmatprep.subr.mxu0 0.0
    %203 = vmatpush1.msra.mxu0 0.0
    %204 = vmatprep.subr.mxu0 0.0
    %205 = vmatpush1.msra.mxu0 0.0
    %206 = vmatprep.subr.mxu0 0.0
    %207 = vmatpush1.msra.mxu0 0.0
    %208 = vmatprep.subr.mxu0 0.0
    %209 = vmatpush1.msra.mxu0 0.0
    %210 = vmatprep.subr.mxu0 0.0
    %211 = vmatpush1.msra.mxu0 0.0
    %212 = vmatprep.subr.mxu0 0.0
    %213 = vmatpush1.msra.mxu0 0.0
    %214 = vmatprep.subr.mxu0 0.0
    %215 = vmatpush1.msra.mxu0 0.0
    %216 = vmatprep.subr.mxu0 0.0
    %217 = vmatpush1.msra.mxu0 0.0
    %218 = vmatprep.subr.mxu0 0.0
    %219 = vmatpush1.msra.mxu0 0.0
    %220 = vmatprep.subr.mxu0 0.0
    %221 = vmatpush1.msra.mxu0 0.0
    %222 = vmatprep.subr.mxu0 0.0
    %223 = vmatpush1.msra.mxu0 0.0
    %224 = vmatprep.subr.mxu0 0.0
    %225 = vmatpush1.msra.mxu0 0.0
    %226 = vmatprep.subr.mxu0 0.0
    %227 = vmatpush1.msra.mxu0 0.0
    %228 = vmatprep.mubr.f32.mxu0 0.0
    %v229 = vand.u32 %v116, 4294901760
    %v230 = vsub.f32 %v116, %v229
    %v231 = vand.u32 %v230, 4294901760
    %v232 = vsub.f32 %v230, %v231
    %v233 = vand.u32 %v232, 4294901760
    %234 = vmatmul.mubr.f32.gmra.mrb[0].mxu0 %v233
    %v235 = vpop.f32.mrb[0].mxu0
    %v236 = vadd.f32 0.0, %v235
    %v237 = vpop.f32.mrb[0].mxu0
    %238 = vmatprep.mubr.f32.mxu0 0.0
    %v239 = vand.u32 %v117, 4294901760
    %v240 = vsub.f32 %v117, %v239
    %v241 = vand.u32 %v240, 4294901760
    %v242 = vsub.f32 %v240, %v241
    %v243 = vand.u32 %v242, 4294901760
    %244 = vmatmul.mubr.f32.gmra.mrb[0].mxu0 %v243
    %v245 = vpop.f32.mrb[0].mxu0
    %v246 = vadd.f32 0.0, %v245
    %v247 = vpop.f32.mrb[0].mxu0
    %248 = vmatprep.mubr.f32.mxu0 0.0
    %v249 = vand.u32 %v118, 4294901760
    %v250 = vsub.f32 %v118, %v249
    %v251 = vand.u32 %v250, 4294901760
    %v252 = vsub.f32 %v250, %v251
    %v253 = vand.u32 %v252, 4294901760
    %254 = vmatmul.mubr.f32.gmra.mrb[0].mxu0 %v253
    %v255 = vpop.f32.mrb[0].mxu0
    %v256 = vadd.f32 0.0, %v255
    %v257 = vpop.f32.mrb[0].mxu0
    %258 = vmatprep.mubr.f32.mxu0 0.0
    %v259 = vand.u32 %v119, 4294901760
    %v260 = vsub.f32 %v119, %v259
    %v261 = vand.u32 %v260, 4294901760
    %v262 = vsub.f32 %v260, %v261
    %v263 = vand.u32 %v262, 4294901760
    %264 = vmatmul.mubr.f32.gmra.mrb[0].mxu0 %v263
    %v265 = vpop.f32.mrb[0].mxu0
    %v266 = vadd.f32 0.0, %v265
    %v267 = vpop.f32.mrb[0].mxu0
    %268 = vmatprep.mubr.f32.mxu0 0.0
    %v269 = vand.u32 %v120, 4294901760
    %v270 = vsub.f32 %v120, %v269
    %v271 = vand.u32 %v270, 4294901760
    %v272 = vsub.f32 %v270, %v271
    %v273 = vand.u32 %v272, 4294901760
    %274 = vmatmul.mubr.f32.gmra.mrb[0].mxu0 %v273
    %v275 = vpop.f32.mrb[0].mxu0
    %v276 = vadd.f32 0.0, %v275
    %v277 = vpop.f32.mrb[0].mxu0
    %278 = vmatprep.mubr.f32.mxu0 0.0
    %v279 = vand.u32 %v121, 4294901760
    %v280 = vsub.f32 %v121, %v279
    %v281 = vand.u32 %v280, 4294901760
    %v282 = vsub.f32 %v280, %v281
    %v283 = vand.u32 %v282, 4294901760
    %284 = vmatmul.mubr.f32.gmra.mrb[0].mxu0 %v283
    %v285 = vpop.f32.mrb[0].mxu0
    %v286 = vadd.f32 0.0, %v285
    %v287 = vpop.f32.mrb[0].mxu0
    %288 = vmatprep.mubr.f32.mxu0 0.0
    %v289 = vand.u32 %v122, 4294901760
    %v290 = vsub.f32 %v122, %v289
    %v291 = vand.u32 %v290, 4294901760
    %v292 = vsub.f32 %v290, %v291
    %v293 = vand.u32 %v292, 4294901760
    %294 = vmatmul.mubr.f32.gmra.mrb[0].mxu0 %v293
    %v295 = vpop.f32.mrb[0].mxu0
    %v296 = vadd.f32 0.0, %v295
    %v297 = vpop.f32.mrb[0].mxu0
    %298 = vmatprep.mubr.f32.mxu0 0.0
    %v299 = vand.u32 %v123, 4294901760
    %v300 = vsub.f32 %v123, %v299
    %v301 = vand.u32 %v300, 4294901760
    %v302 = vsub.f32 %v300, %v301
    %v303 = vand.u32 %v302, 4294901760
    %304 = vmatmul.mubr.f32.gmra.mrb[0].mxu0 %v303
    %v305 = vpop.f32.mrb[0].mxu0
    %v306 = vadd.f32 0.0, %v305
    %v307 = vpop.f32.mrb[0].mxu0
    %308 = vmatprep.mubr.f32.mxu0 0.0
    %v309 = vand.u32 %v124, 4294901760
    %v310 = vsub.f32 %v124, %v309
    %v311 = vand.u32 %v310, 4294901760
    %v312 = vsub.f32 %v310, %v311
    %v313 = vand.u32 %v312, 4294901760
    %314 = vmatmul.mubr.f32.gmra.mrb[0].mxu0 %v313
    %v315 = vpop.f32.mrb[0].mxu0
    %v316 = vadd.f32 0.0, %v315
    %v317 = vpop.f32.mrb[0].mxu0
    %318 = vmatprep.mubr.f32.mxu0 0.0
    %v319 = vand.u32 %v125, 4294901760
    %v320 = vsub.f32 %v125, %v319
    %v321 = vand.u32 %v320, 4294901760
    %v322 = vsub.f32 %v320, %v321
    %v323 = vand.u32 %v322, 4294901760
    %324 = vmatmul.mubr.f32.gmra.mrb[0].mxu0 %v323
    %v325 = vpop.f32.mrb[0].mxu0
    %v326 = vadd.f32 0.0, %v325
    %v327 = vpop.f32.mrb[0].mxu0
    %328 = vmatprep.mubr.f32.mxu0 0.0
    %v329 = vand.u32 %v126, 4294901760
    %v330 = vsub.f32 %v126, %v329
    %v331 = vand.u32 %v330, 4294901760
    %v332 = vsub.f32 %v330, %v331
    %v333 = vand.u32 %v332, 4294901760
    %334 = vmatmul.mubr.f32.gmra.mrb[0].mxu0 %v333
    %v335 = vpop.f32.mrb[0].mxu0
    %v336 = vadd.f32 0.0, %v335
    %v337 = vpop.f32.mrb[0].mxu0
    %338 = vmatprep.mubr.f32.mxu0 0.0
    %v339 = vand.u32 %v127, 4294901760
    %v340 = vsub.f32 %v127, %v339
    %v341 = vand.u32 %v340, 4294901760
    %v342 = vsub.f32 %v340, %v341
    %v343 = vand.u32 %v342, 4294901760
    %344 = vmatmul.mubr.f32.gmra.mrb[0].mxu0 %v343
    %v345 = vpop.f32.mrb[0].mxu0
    %v346 = vadd.f32 0.0, %v345
    %v347 = vpop.f32.mrb[0].mxu0
    %348 = vmatprep.mubr.f32.mxu0 0.0
    %v349 = vand.u32 %v128, 4294901760
    %v350 = vsub.f32 %v128, %v349
    %v351 = vand.u32 %v350, 4294901760
    %v352 = vsub.f32 %v350, %v351
    %v353 = vand.u32 %v352, 4294901760
    %354 = vmatmul.mubr.f32.gmra.mrb[0].mxu0 %v353
    %v355 = vpop.f32.mrb[0].mxu0
    %v356 = vadd.f32 0.0, %v355
    %v357 = vpop.f32.mrb[0].mxu0
    %358 = vmatprep.mubr.f32.mxu0 0.0
    %v359 = vand.u32 %v129, 4294901760
    %v360 = vsub.f32 %v129, %v359
    %v361 = vand.u32 %v360, 4294901760
    %v362 = vsub.f32 %v360, %v361
    %v363 = vand.u32 %v362, 4294901760
    %364 = vmatmul.mubr.f32.gmra.mrb[0].mxu0 %v363
    %v365 = vpop.f32.mrb[0].mxu0
    %v366 = vadd.f32 0.0, %v365
    %v367 = vpop.f32.mrb[0].mxu0
    %368 = vmatprep.mubr.f32.mxu0 0.0
    %v369 = vand.u32 %v130, 4294901760
    %v370 = vsub.f32 %v130, %v369
    %v371 = vand.u32 %v370, 4294901760
    %v372 = vsub.f32 %v370, %v371
    %v373 = vand.u32 %v372, 4294901760
    %374 = vmatmul.mubr.f32.gmra.mrb[0].mxu0 %v373
    %v375 = vpop.f32.mrb[0].mxu0
    %v376 = vadd.f32 0.0, %v375
    %v377 = vpop.f32.mrb[0].mxu0
    %378 = vmatprep.mubr.f32.mxu0 0.0
    %v379 = vand.u32 %v131, 4294901760
    %v380 = vsub.f32 %v131, %v379
    %v381 = vand.u32 %v380, 4294901760
    %v382 = vsub.f32 %v380, %v381
    %v383 = vand.u32 %v382, 4294901760
    %384 = vmatmul.mubr.f32.gmra.mrb[0].mxu0 %v383
    %v385 = vpop.f32.mrb[0].mxu0
    %v386 = vadd.f32 0.0, %v385
    %v387 = vpop.f32.mrb[0].mxu0
    %388 = vdwg.mxu0
    %389 = vmatprep.subr.mxu0 0.0
    %v390 = vand.u32 %v132, 4294901760
    %v391 = vsub.f32 %v132, %v390
    %v392 = vand.u32 %v391, 4294901760
    %v393 = vsub.f32 %v391, %v392
    %v394 = vand.u32 %v393, 4294901760
    %395 = vmatpush1.msra.mxu0 %v394
    %396 = vmatprep.subr.mxu0 0.0
    %v397 = vand.u32 %v133, 4294901760
    %v398 = vsub.f32 %v133, %v397
    %v399 = vand.u32 %v398, 4294901760
    %v400 = vsub.f32 %v398, %v399
    %v401 = vand.u32 %v400, 4294901760
    %402 = vmatpush1.msra.mxu0 %v401
    %403 = vmatprep.subr.mxu0 0.0
    %v404 = vand.u32 %v134, 4294901760
    %v405 = vsub.f32 %v134, %v404
    %v406 = vand.u32 %v405, 4294901760
    %v407 = vsub.f32 %v405, %v406
    %v408 = vand.u32 %v407, 4294901760
    %409 = vmatpush1.msra.mxu0 %v408
    %410 = vmatprep.subr.mxu0 0.0
    %v411 = vand.u32 %v135, 4294901760
    %v412 = vsub.f32 %v135, %v411
    %v413 = vand.u32 %v412, 4294901760
    %v414 = vsub.f32 %v412, %v413
    %v415 = vand.u32 %v414, 4294901760
    %416 = vmatpush1.msra.mxu0 %v415
    %417 = vmatprep.subr.mxu0 0.0
    %v418 = vand.u32 %v136, 4294901760
    %v419 = vsub.f32 %v136, %v418
    %v420 = vand.u32 %v419, 4294901760
    %v421 = vsub.f32 %v419, %v420
    %v422 = vand.u32 %v421, 4294901760
    %423 = vmatpush1.msra.mxu0 %v422
    %424 = vmatprep.subr.mxu0 0.0
    %v425 = vand.u32 %v137, 4294901760
    %v426 = vsub.f32 %v137, %v425
    %v427 = vand.u32 %v426, 4294901760
    %v428 = vsub.f32 %v426, %v427
    %v429 = vand.u32 %v428, 4294901760
    %430 = vmatpush1.msra.mxu0 %v429
    %431 = vmatprep.subr.mxu0 0.0
    %v432 = vand.u32 %v138, 4294901760
    %v433 = vsub.f32 %v138, %v432
    %v434 = vand.u32 %v433, 4294901760
    %v435 = vsub.f32 %v433, %v434
    %v436 = vand.u32 %v435, 4294901760
    %437 = vmatpush1.msra.mxu0 %v436
    %438 = vmatprep.subr.mxu0 0.0
    %v439 = vand.u32 %v139, 4294901760
    %v440 = vsub.f32 %v139, %v439
    %v441 = vand.u32 %v440, 4294901760
    %v442 = vsub.f32 %v440, %v441
    %v443 = vand.u32 %v442, 4294901760
    %444 = vmatpush1.msra.mxu0 %v443
    %445 = vmatprep.subr.mxu0 0.0
    %v446 = vand.u32 %v140, 4294901760
    %v447 = vsub.f32 %v140, %v446
    %v448 = vand.u32 %v447, 4294901760
    %v449 = vsub.f32 %v447, %v448
    %v450 = vand.u32 %v449, 4294901760
    %451 = vmatpush1.msra.mxu0 %v450
    %452 = vmatprep.subr.mxu0 0.0
    %v453 = vand.u32 %v141, 4294901760
    %v454 = vsub.f32 %v141, %v453
    %v455 = vand.u32 %v454, 4294901760
    %v456 = vsub.f32 %v454, %v455
    %v457 = vand.u32 %v456, 4294901760
    %458 = vmatpush1.msra.mxu0 %v457
    %459 = vmatprep.subr.mxu0 0.0
    %v460 = vand.u32 %v142, 4294901760
    %v461 = vsub.f32 %v142, %v460
    %v462 = vand.u32 %v461, 4294901760
    %v463 = vsub.f32 %v461, %v462
    %v464 = vand.u32 %v463, 4294901760
    %465 = vmatpush1.msra.mxu0 %v464
    %466 = vmatprep.subr.mxu0 0.0
    %v467 = vand.u32 %v143, 4294901760
    %v468 = vsub.f32 %v143, %v467
    %v469 = vand.u32 %v468, 4294901760
    %v470 = vsub.f32 %v468, %v469
    %v471 = vand.u32 %v470, 4294901760
    %472 = vmatpush1.msra.mxu0 %v471
    %473 = vmatprep.subr.mxu0 0.0
    %v474 = vand.u32 %v144, 4294901760
    %v475 = vsub.f32 %v144, %v474
    %v476 = vand.u32 %v475, 4294901760
    %v477 = vsub.f32 %v475, %v476
    %v478 = vand.u32 %v477, 4294901760
    %479 = vmatpush1.msra.mxu0 %v478
    %480 = vmatprep.subr.mxu0 0.0
    %v481 = vand.u32 %v145, 4294901760
    %v482 = vsub.f32 %v145, %v481
    %v483 = vand.u32 %v482, 4294901760
    %v484 = vsub.f32 %v482, %v483
    %v485 = vand.u32 %v484, 4294901760
    %486 = vmatpush1.msra.mxu0 %v485
    %487 = vmatprep.subr.mxu0 0.0
    %v488 = vand.u32 %v146, 4294901760
    %v489 = vsub.f32 %v146, %v488
    %v490 = vand.u32 %v489, 4294901760
    %v491 = vsub.f32 %v489, %v490
    %v492 = vand.u32 %v491, 4294901760
    %493 = vmatpush1.msra.mxu0 %v492
    %494 = vmatprep.subr.mxu0 0.0
    %v495 = vand.u32 %v147, 4294901760
    %v496 = vsub.f32 %v147, %v495
    %v497 = vand.u32 %v496, 4294901760
    %v498 = vsub.f32 %v496, %v497
    %v499 = vand.u32 %v498, 4294901760
    %500 = vmatpush1.msra.mxu0 %v499
    %501 = vmatprep.subr.mxu0 0.0
    %502 = vmatpush1.msra.mxu0 0.0
    %503 = vmatprep.subr.mxu0 0.0
    %504 = vmatpush1.msra.mxu0 0.0
    %505 = vmatprep.subr.mxu0 0.0
    %506 = vmatpush1.msra.mxu0 0.0
    %507 = vmatprep.subr.mxu0 0.0
    %508 = vmatpush1.msra.mxu0 0.0
    %509 = vmatprep.subr.mxu0 0.0
    %510 = vmatpush1.msra.mxu0 0.0
    %511 = vmatprep.subr.mxu0 0.0
    %512 = vmatpush1.msra.mxu0 0.0
    %513 = vmatprep.subr.mxu0 0.0
    %514 = vmatpush1.msra.mxu0 0.0
    %515 = vmatprep.subr.mxu0 0.0
    %516 = vmatpush1.msra.mxu0 0.0
    %517 = vmatprep.subr.mxu0 0.0
    %518 = vmatpush1.msra.mxu0 0.0
    %519 = vmatprep.subr.mxu0 0.0
    %520 = vmatpush1.msra.mxu0 0.0
    %521 = vmatprep.subr.mxu0 0.0
    %522 = vmatpush1.msra.mxu0 0.0
    %523 = vmatprep.subr.mxu0 0.0
    %524 = vmatpush1.msra.mxu0 0.0
    %525 = vmatprep.subr.mxu0 0.0
    %526 = vmatpush1.msra.mxu0 0.0
    %527 = vmatprep.subr.mxu0 0.0
    %528 = vmatpush1.msra.mxu0 0.0
    %529 = vmatprep.subr.mxu0 0.0
    %530 = vmatpush1.msra.mxu0 0.0
    %531 = vmatprep.subr.mxu0 0.0
    %532 = vmatpush1.msra.mxu0 0.0
    %533 = vmatprep.mubr.f32.mxu0 0.0
    %v534 = vand.u32 %v116, 4294901760
    %535 = vmatmul.mubr.f32.gmra.mrb[0].mxu0 %v534
    %v536 = vpop.f32.mrb[0].mxu0
    %v537 = vadd.f32 %v236, %v536
    %v538 = vpop.f32.mrb[0].mxu0
    %539 = vmatprep.mubr.f32.mxu0 0.0
    %v540 = vand.u32 %v117, 4294901760
    %541 = vmatmul.mubr.f32.gmra.mrb[0].mxu0 %v540
    %v542 = vpop.f32.mrb[0].mxu0
    %v543 = vadd.f32 %v246, %v542
    %v544 = vpop.f32.mrb[0].mxu0
    %545 = vmatprep.mubr.f32.mxu0 0.0
    %v546 = vand.u32 %v118, 4294901760
    %547 = vmatmul.mubr.f32.gmra.mrb[0].mxu0 %v546
    %v548 = vpop.f32.mrb[0].mxu0
    %v549 = vadd.f32 %v256, %v548
    %v550 = vpop.f32.mrb[0].mxu0
    %551 = vmatprep.mubr.f32.mxu0 0.0
    %v552 = vand.u32 %v119, 4294901760
    %553 = vmatmul.mubr.f32.gmra.mrb[0].mxu0 %v552
    %v554 = vpop.f32.mrb[0].mxu0
    %v555 = vadd.f32 %v266, %v554
    %v556 = vpop.f32.mrb[0].mxu0
    %557 = vmatprep.mubr.f32.mxu0 0.0
    %v558 = vand.u32 %v120, 4294901760
    %559 = vmatmul.mubr.f32.gmra.mrb[0].mxu0 %v558
    %v560 = vpop.f32.mrb[0].mxu0
    %v561 = vadd.f32 %v276, %v560
    %v562 = vpop.f32.mrb[0].mxu0
    %563 = vmatprep.mubr.f32.mxu0 0.0
    %v564 = vand.u32 %v121, 4294901760
    %565 = vmatmul.mubr.f32.gmra.mrb[0].mxu0 %v564
    %v566 = vpop.f32.mrb[0].mxu0
    %v567 = vadd.f32 %v286, %v566
    %v568 = vpop.f32.mrb[0].mxu0
    %569 = vmatprep.mubr.f32.mxu0 0.0
    %v570 = vand.u32 %v122, 4294901760
    %571 = vmatmul.mubr.f32.gmra.mrb[0].mxu0 %v570
    %v572 = vpop.f32.mrb[0].mxu0
    %v573 = vadd.f32 %v296, %v572
    %v574 = vpop.f32.mrb[0].mxu0
    %575 = vmatprep.mubr.f32.mxu0 0.0
    %v576 = vand.u32 %v123, 4294901760
    %577 = vmatmul.mubr.f32.gmra.mrb[0].mxu0 %v576
    %v578 = vpop.f32.mrb[0].mxu0
    %v579 = vadd.f32 %v306, %v578
    %v580 = vpop.f32.mrb[0].mxu0
    %581 = vmatprep.mubr.f32.mxu0 0.0
    %v582 = vand.u32 %v124, 4294901760
    %583 = vmatmul.mubr.f32.gmra.mrb[0].mxu0 %v582
    %v584 = vpop.f32.mrb[0].mxu0
    %v585 = vadd.f32 %v316, %v584
    %v586 = vpop.f32.mrb[0].mxu0
    %587 = vmatprep.mubr.f32.mxu0 0.0
    %v588 = vand.u32 %v125, 4294901760
    %589 = vmatmul.mubr.f32.gmra.mrb[0].mxu0 %v588
    %v590 = vpop.f32.mrb[0].mxu0
    %v591 = vadd.f32 %v326, %v590
    %v592 = vpop.f32.mrb[0].mxu0
    %593 = vmatprep.mubr.f32.mxu0 0.0
    %v594 = vand.u32 %v126, 4294901760
    %595 = vmatmul.mubr.f32.gmra.mrb[0].mxu0 %v594
    %v596 = vpop.f32.mrb[0].mxu0
    %v597 = vadd.f32 %v336, %v596
    %v598 = vpop.f32.mrb[0].mxu0
    %599 = vmatprep.mubr.f32.mxu0 0.0
    %v600 = vand.u32 %v127, 4294901760
    %601 = vmatmul.mubr.f32.gmra.mrb[0].mxu0 %v600
    %v602 = vpop.f32.mrb[0].mxu0
    %v603 = vadd.f32 %v346, %v602
    %v604 = vpop.f32.mrb[0].mxu0
    %605 = vmatprep.mubr.f32.mxu0 0.0
    %v606 = vand.u32 %v128, 4294901760
    %607 = vmatmul.mubr.f32.gmra.mrb[0].mxu0 %v606
    %v608 = vpop.f32.mrb[0].mxu0
    %v609 = vadd.f32 %v356, %v608
    %v610 = vpop.f32.mrb[0].mxu0
    %611 = vmatprep.mubr.f32.mxu0 0.0
    %v612 = vand.u32 %v129, 4294901760
    %613 = vmatmul.mubr.f32.gmra.mrb[0].mxu0 %v612
    %v614 = vpop.f32.mrb[0].mxu0
    %v615 = vadd.f32 %v366, %v614
    %v616 = vpop.f32.mrb[0].mxu0
    %617 = vmatprep.mubr.f32.mxu0 0.0
    %v618 = vand.u32 %v130, 4294901760
    %619 = vmatmul.mubr.f32.gmra.mrb[0].mxu0 %v618
    %v620 = vpop.f32.mrb[0].mxu0
    %v621 = vadd.f32 %v376, %v620
    %v622 = vpop.f32.mrb[0].mxu0
    %623 = vmatprep.mubr.f32.mxu0 0.0
    %v624 = vand.u32 %v131, 4294901760
    %625 = vmatmul.mubr.f32.gmra.mrb[0].mxu0 %v624
    %v626 = vpop.f32.mrb[0].mxu0
    %v627 = vadd.f32 %v386, %v626
    %v628 = vpop.f32.mrb[0].mxu0
    %629 = vdwg.mxu0
    %630 = vmatprep.subr.mxu0 0.0
    %v631 = vand.u32 %v132, 4294901760
    %v632 = vsub.f32 %v132, %v631
    %633 = vmatpush1.msra.mxu0 %v632
    %634 = vmatprep.subr.mxu0 0.0
    %v635 = vand.u32 %v133, 4294901760
    %v636 = vsub.f32 %v133, %v635
    %637 = vmatpush1.msra.mxu0 %v636
    %638 = vmatprep.subr.mxu0 0.0
    %v639 = vand.u32 %v134, 4294901760
    %v640 = vsub.f32 %v134, %v639
    %641 = vmatpush1.msra.mxu0 %v640
    %642 = vmatprep.subr.mxu0 0.0
    %v643 = vand.u32 %v135, 4294901760
    %v644 = vsub.f32 %v135, %v643
    %645 = vmatpush1.msra.mxu0 %v644
    %646 = vmatprep.subr.mxu0 0.0
    %v647 = vand.u32 %v136, 4294901760
    %v648 = vsub.f32 %v136, %v647
    %649 = vmatpush1.msra.mxu0 %v648
    %650 = vmatprep.subr.mxu0 0.0
    %v651 = vand.u32 %v137, 4294901760
    %v652 = vsub.f32 %v137, %v651
    %653 = vmatpush1.msra.mxu0 %v652
    %654 = vmatprep.subr.mxu0 0.0
    %v655 = vand.u32 %v138, 4294901760
    %v656 = vsub.f32 %v138, %v655
    %657 = vmatpush1.msra.mxu0 %v656
    %658 = vmatprep.subr.mxu0 0.0
    %v659 = vand.u32 %v139, 4294901760
    %v660 = vsub.f32 %v139, %v659
    %661 = vmatpush1.msra.mxu0 %v660
    %662 = vmatprep.subr.mxu0 0.0
    %v663 = vand.u32 %v140, 4294901760
    %v664 = vsub.f32 %v140, %v663
    %665 = vmatpush1.msra.mxu0 %v664
    %666 = vmatprep.subr.mxu0 0.0
    %v667 = vand.u32 %v141, 4294901760
    %v668 = vsub.f32 %v141, %v667
    %669 = vmatpush1.msra.mxu0 %v668
    %670 = vmatprep.subr.mxu0 0.0
    %v671 = vand.u32 %v142, 4294901760
    %v672 = vsub.f32 %v142, %v671
    %673 = vmatpush1.msra.mxu0 %v672
    %674 = vmatprep.subr.mxu0 0.0
    %v675 = vand.u32 %v143, 4294901760
    %v676 = vsub.f32 %v143, %v675
    %677 = vmatpush1.msra.mxu0 %v676
    %678 = vmatprep.subr.mxu0 0.0
    %v679 = vand.u32 %v144, 4294901760
    %v680 = vsub.f32 %v144, %v679
    %681 = vmatpush1.msra.mxu0 %v680
    %682 = vmatprep.subr.mxu0 0.0
    %v683 = vand.u32 %v145, 4294901760
    %v684 = vsub.f32 %v145, %v683
    %685 = vmatpush1.msra.mxu0 %v684
    %686 = vmatprep.subr.mxu0 0.0
    %v687 = vand.u32 %v146, 4294901760
    %v688 = vsub.f32 %v146, %v687
    %689 = vmatpush1.msra.mxu0 %v688
    %690 = vmatprep.subr.mxu0 0.0
    %v691 = vand.u32 %v147, 4294901760
    %v692 = vsub.f32 %v147, %v691
    %693 = vmatpush1.msra.mxu0 %v692
    %694 = vmatprep.subr.mxu0 0.0
    %695 = vmatpush1.msra.mxu0 0.0
    %696 = vmatprep.subr.mxu0 0.0
    %697 = vmatpush1.msra.mxu0 0.0
    %698 = vmatprep.subr.mxu0 0.0
    %699 = vmatpush1.msra.mxu0 0.0
    %700 = vmatprep.subr.mxu0 0.0
    %701 = vmatpush1.msra.mxu0 0.0
    %702 = vmatprep.subr.mxu0 0.0
    %703 = vmatpush1.msra.mxu0 0.0
    %704 = vmatprep.subr.mxu0 0.0
    %705 = vmatpush1.msra.mxu0 0.0
    %706 = vmatprep.subr.mxu0 0.0
    %707 = vmatpush1.msra.mxu0 0.0
    %708 = vmatprep.subr.mxu0 0.0
    %709 = vmatpush1.msra.mxu0 0.0
    %710 = vmatprep.subr.mxu0 0.0
    %711 = vmatpush1.msra.mxu0 0.0
    %712 = vmatprep.subr.mxu0 0.0
    %713 = vmatpush1.msra.mxu0 0.0
    %714 = vmatprep.subr.mxu0 0.0
    %715 = vmatpush1.msra.mxu0 0.0
    %716 = vmatprep.subr.mxu0 0.0
    %717 = vmatpush1.msra.mxu0 0.0
    %718 = vmatprep.subr.mxu0 0.0
    %719 = vmatpush1.msra.mxu0 0.0
    %720 = vmatprep.subr.mxu0 0.0
    %721 = vmatpush1.msra.mxu0 0.0
    %722 = vmatprep.subr.mxu0 0.0
    %723 = vmatpush1.msra.mxu0 0.0
    %724 = vmatprep.subr.mxu0 0.0
    %725 = vmatpush1.msra.mxu0 0.0
    %726 = vmatprep.mubr.f32.mxu0 0.0
    %v727 = vand.u32 %v116, 4294901760
    %v728 = vsub.f32 %v116, %v727
    %729 = vmatmul.mubr.f32.gmra.mrb[0].mxu0 %v728
    %v730 = vpop.f32.mrb[0].mxu0
    %v731 = vadd.f32 %v537, %v730
    %v732 = vpop.f32.mrb[0].mxu0
    %733 = vmatprep.mubr.f32.mxu0 0.0
    %v734 = vand.u32 %v117, 4294901760
    %v735 = vsub.f32 %v117, %v734
    %736 = vmatmul.mubr.f32.gmra.mrb[0].mxu0 %v735
    %v737 = vpop.f32.mrb[0].mxu0
    %v738 = vadd.f32 %v543, %v737
    %v739 = vpop.f32.mrb[0].mxu0
    %740 = vmatprep.mubr.f32.mxu0 0.0
    %v741 = vand.u32 %v118, 4294901760
    %v742 = vsub.f32 %v118, %v741
    %743 = vmatmul.mubr.f32.gmra.mrb[0].mxu0 %v742
    %v744 = vpop.f32.mrb[0].mxu0
    %v745 = vadd.f32 %v549, %v744
    %v746 = vpop.f32.mrb[0].mxu0
    %747 = vmatprep.mubr.f32.mxu0 0.0
    %v748 = vand.u32 %v119, 4294901760
    %v749 = vsub.f32 %v119, %v748
    %750 = vmatmul.mubr.f32.gmra.mrb[0].mxu0 %v749
    %v751 = vpop.f32.mrb[0].mxu0
    %v752 = vadd.f32 %v555, %v751
    %v753 = vpop.f32.mrb[0].mxu0
    %754 = vmatprep.mubr.f32.mxu0 0.0
    %v755 = vand.u32 %v120, 4294901760
    %v756 = vsub.f32 %v120, %v755
    %757 = vmatmul.mubr.f32.gmra.mrb[0].mxu0 %v756
    %v758 = vpop.f32.mrb[0].mxu0
    %v759 = vadd.f32 %v561, %v758
    %v760 = vpop.f32.mrb[0].mxu0
    %761 = vmatprep.mubr.f32.mxu0 0.0
    %v762 = vand.u32 %v121, 4294901760
    %v763 = vsub.f32 %v121, %v762
    %764 = vmatmul.mubr.f32.gmra.mrb[0].mxu0 %v763
    %v765 = vpop.f32.mrb[0].mxu0
    %v766 = vadd.f32 %v567, %v765
    %v767 = vpop.f32.mrb[0].mxu0
    %768 = vmatprep.mubr.f32.mxu0 0.0
    %v769 = vand.u32 %v122, 4294901760
    %v770 = vsub.f32 %v122, %v769
    %771 = vmatmul.mubr.f32.gmra.mrb[0].mxu0 %v770
    %v772 = vpop.f32.mrb[0].mxu0
    %v773 = vadd.f32 %v573, %v772
    %v774 = vpop.f32.mrb[0].mxu0
    %775 = vmatprep.mubr.f32.mxu0 0.0
    %v776 = vand.u32 %v123, 4294901760
    %v777 = vsub.f32 %v123, %v776
    %778 = vmatmul.mubr.f32.gmra.mrb[0].mxu0 %v777
    %v779 = vpop.f32.mrb[0].mxu0
    %v780 = vadd.f32 %v579, %v779
    %v781 = vpop.f32.mrb[0].mxu0
    %782 = vmatprep.mubr.f32.mxu0 0.0
    %v783 = vand.u32 %v124, 4294901760
    %v784 = vsub.f32 %v124, %v783
    %785 = vmatmul.mubr.f32.gmra.mrb[0].mxu0 %v784
    %v786 = vpop.f32.mrb[0].mxu0
    %v787 = vadd.f32 %v585, %v786
    %v788 = vpop.f32.mrb[0].mxu0
    %789 = vmatprep.mubr.f32.mxu0 0.0
    %v790 = vand.u32 %v125, 4294901760
    %v791 = vsub.f32 %v125, %v790
    %792 = vmatmul.mubr.f32.gmra.mrb[0].mxu0 %v791
    %v793 = vpop.f32.mrb[0].mxu0
    %v794 = vadd.f32 %v591, %v793
    %v795 = vpop.f32.mrb[0].mxu0
    %796 = vmatprep.mubr.f32.mxu0 0.0
    %v797 = vand.u32 %v126, 4294901760
    %v798 = vsub.f32 %v126, %v797
    %799 = vmatmul.mubr.f32.gmra.mrb[0].mxu0 %v798
    %v800 = vpop.f32.mrb[0].mxu0
    %v801 = vadd.f32 %v597, %v800
    %v802 = vpop.f32.mrb[0].mxu0
    %803 = vmatprep.mubr.f32.mxu0 0.0
    %v804 = vand.u32 %v127, 4294901760
    %v805 = vsub.f32 %v127, %v804
    %806 = vmatmul.mubr.f32.gmra.mrb[0].mxu0 %v805
    %v807 = vpop.f32.mrb[0].mxu0
    %v808 = vadd.f32 %v603, %v807
    %v809 = vpop.f32.mrb[0].mxu0
    %810 = vmatprep.mubr.f32.mxu0 0.0
    %v811 = vand.u32 %v128, 4294901760
    %v812 = vsub.f32 %v128, %v811
    %813 = vmatmul.mubr.f32.gmra.mrb[0].mxu0 %v812
    %v814 = vpop.f32.mrb[0].mxu0
    %v815 = vadd.f32 %v609, %v814
    %v816 = vpop.f32.mrb[0].mxu0
    %817 = vmatprep.mubr.f32.mxu0 0.0
    %v818 = vand.u32 %v129, 4294901760
    %v819 = vsub.f32 %v129, %v818
    %820 = vmatmul.mubr.f32.gmra.mrb[0].mxu0 %v819
    %v821 = vpop.f32.mrb[0].mxu0
    %v822 = vadd.f32 %v615, %v821
    %v823 = vpop.f32.mrb[0].mxu0
    %824 = vmatprep.mubr.f32.mxu0 0.0
    %v825 = vand.u32 %v130, 4294901760
    %v826 = vsub.f32 %v130, %v825
    %827 = vmatmul.mubr.f32.gmra.mrb[0].mxu0 %v826
    %v828 = vpop.f32.mrb[0].mxu0
    %v829 = vadd.f32 %v621, %v828
    %v830 = vpop.f32.mrb[0].mxu0
    %831 = vmatprep.mubr.f32.mxu0 0.0
    %v832 = vand.u32 %v131, 4294901760
    %v833 = vsub.f32 %v131, %v832
    %834 = vmatmul.mubr.f32.gmra.mrb[0].mxu0 %v833
    %v835 = vpop.f32.mrb[0].mxu0
    %v836 = vadd.f32 %v627, %v835
    %v837 = vpop.f32.mrb[0].mxu0
    %838 = vdwg.mxu0
    %839 = vmatprep.subr.mxu0 0.0
    %v840 = vand.u32 %v132, 4294901760
    %841 = vmatpush1.msra.mxu0 %v840
    %842 = vmatprep.subr.mxu0 0.0
    %v843 = vand.u32 %v133, 4294901760
    %844 = vmatpush1.msra.mxu0 %v843
    %845 = vmatprep.subr.mxu0 0.0
    %v846 = vand.u32 %v134, 4294901760
    %847 = vmatpush1.msra.mxu0 %v846
    %848 = vmatprep.subr.mxu0 0.0
    %v849 = vand.u32 %v135, 4294901760
    %850 = vmatpush1.msra.mxu0 %v849
    %851 = vmatprep.subr.mxu0 0.0
    %v852 = vand.u32 %v136, 4294901760
    %853 = vmatpush1.msra.mxu0 %v852
    %854 = vmatprep.subr.mxu0 0.0
    %v855 = vand.u32 %v137, 4294901760
    %856 = vmatpush1.msra.mxu0 %v855
    %857 = vmatprep.subr.mxu0 0.0
    %v858 = vand.u32 %v138, 4294901760
    %859 = vmatpush1.msra.mxu0 %v858
    %860 = vmatprep.subr.mxu0 0.0
    %v861 = vand.u32 %v139, 4294901760
    %862 = vmatpush1.msra.mxu0 %v861
    %863 = vmatprep.subr.mxu0 0.0
    %v864 = vand.u32 %v140, 4294901760
    %865 = vmatpush1.msra.mxu0 %v864
    %866 = vmatprep.subr.mxu0 0.0
    %v867 = vand.u32 %v141, 4294901760
    %868 = vmatpush1.msra.mxu0 %v867
    %869 = vmatprep.subr.mxu0 0.0
    %v870 = vand.u32 %v142, 4294901760
    %871 = vmatpush1.msra.mxu0 %v870
    %872 = vmatprep.subr.mxu0 0.0
    %v873 = vand.u32 %v143, 4294901760
    %874 = vmatpush1.msra.mxu0 %v873
    %875 = vmatprep.subr.mxu0 0.0
    %v876 = vand.u32 %v144, 4294901760
    %877 = vmatpush1.msra.mxu0 %v876
    %878 = vmatprep.subr.mxu0 0.0
    %v879 = vand.u32 %v145, 4294901760
    %880 = vmatpush1.msra.mxu0 %v879
    %881 = vmatprep.subr.mxu0 0.0
    %v882 = vand.u32 %v146, 4294901760
    %883 = vmatpush1.msra.mxu0 %v882
    %884 = vmatprep.subr.mxu0 0.0
    %v885 = vand.u32 %v147, 4294901760
    %886 = vmatpush1.msra.mxu0 %v885
    %887 = vmatprep.subr.mxu0 0.0
    %888 = vmatpush1.msra.mxu0 0.0
    %889 = vmatprep.subr.mxu0 0.0
    %890 = vmatpush1.msra.mxu0 0.0
    %891 = vmatprep.subr.mxu0 0.0
    %892 = vmatpush1.msra.mxu0 0.0
    %893 = vmatprep.subr.mxu0 0.0
    %894 = vmatpush1.msra.mxu0 0.0
    %895 = vmatprep.subr.mxu0 0.0
    %896 = vmatpush1.msra.mxu0 0.0
    %897 = vmatprep.subr.mxu0 0.0
    %898 = vmatpush1.msra.mxu0 0.0
    %899 = vmatprep.subr.mxu0 0.0
    %900 = vmatpush1.msra.mxu0 0.0
    %901 = vmatprep.subr.mxu0 0.0
    %902 = vmatpush1.msra.mxu0 0.0
    %903 = vmatprep.subr.mxu0 0.0
    %904 = vmatpush1.msra.mxu0 0.0
    %905 = vmatprep.subr.mxu0 0.0
    %906 = vmatpush1.msra.mxu0 0.0
    %907 = vmatprep.subr.mxu0 0.0
    %908 = vmatpush1.msra.mxu0 0.0
    %909 = vmatprep.subr.mxu0 0.0
    %910 = vmatpush1.msra.mxu0 0.0
    %911 = vmatprep.subr.mxu0 0.0
    %912 = vmatpush1.msra.mxu0 0.0
    %913 = vmatprep.subr.mxu0 0.0
    %914 = vmatpush1.msra.mxu0 0.0
    %915 = vmatprep.subr.mxu0 0.0
    %916 = vmatpush1.msra.mxu0 0.0
    %917 = vmatprep.subr.mxu0 0.0
    %918 = vmatpush1.msra.mxu0 0.0
    %919 = vmatprep.mubr.f32.mxu0 0.0
    %v920 = vand.u32 %v116, 4294901760
    %v921 = vsub.f32 %v116, %v920
    %v922 = vand.u32 %v921, 4294901760
    %923 = vmatmul.mubr.f32.gmra.mrb[0].mxu0 %v922
    %v924 = vpop.f32.mrb[0].mxu0
    %v925 = vadd.f32 %v731, %v924
    %v926 = vpop.f32.mrb[0].mxu0
    %927 = vmatprep.mubr.f32.mxu0 0.0
    %v928 = vand.u32 %v117, 4294901760
    %v929 = vsub.f32 %v117, %v928
    %v930 = vand.u32 %v929, 4294901760
    %931 = vmatmul.mubr.f32.gmra.mrb[0].mxu0 %v930
    %v932 = vpop.f32.mrb[0].mxu0
    %v933 = vadd.f32 %v738, %v932
    %v934 = vpop.f32.mrb[0].mxu0
    %935 = vmatprep.mubr.f32.mxu0 0.0
    %v936 = vand.u32 %v118, 4294901760
    %v937 = vsub.f32 %v118, %v936
    %v938 = vand.u32 %v937, 4294901760
    %939 = vmatmul.mubr.f32.gmra.mrb[0].mxu0 %v938
    %v940 = vpop.f32.mrb[0].mxu0
    %v941 = vadd.f32 %v745, %v940
    %v942 = vpop.f32.mrb[0].mxu0
    %943 = vmatprep.mubr.f32.mxu0 0.0
    %v944 = vand.u32 %v119, 4294901760
    %v945 = vsub.f32 %v119, %v944
    %v946 = vand.u32 %v945, 4294901760
    %947 = vmatmul.mubr.f32.gmra.mrb[0].mxu0 %v946
    %v948 = vpop.f32.mrb[0].mxu0
    %v949 = vadd.f32 %v752, %v948
    %v950 = vpop.f32.mrb[0].mxu0
    %951 = vmatprep.mubr.f32.mxu0 0.0
    %v952 = vand.u32 %v120, 4294901760
    %v953 = vsub.f32 %v120, %v952
    %v954 = vand.u32 %v953, 4294901760
    %955 = vmatmul.mubr.f32.gmra.mrb[0].mxu0 %v954
    %v956 = vpop.f32.mrb[0].mxu0
    %v957 = vadd.f32 %v759, %v956
    %v958 = vpop.f32.mrb[0].mxu0
    %959 = vmatprep.mubr.f32.mxu0 0.0
    %v960 = vand.u32 %v121, 4294901760
    %v961 = vsub.f32 %v121, %v960
    %v962 = vand.u32 %v961, 4294901760
    %963 = vmatmul.mubr.f32.gmra.mrb[0].mxu0 %v962
    %v964 = vpop.f32.mrb[0].mxu0
    %v965 = vadd.f32 %v766, %v964
    %v966 = vpop.f32.mrb[0].mxu0
    %967 = vmatprep.mubr.f32.mxu0 0.0
    %v968 = vand.u32 %v122, 4294901760
    %v969 = vsub.f32 %v122, %v968
    %v970 = vand.u32 %v969, 4294901760
    %971 = vmatmul.mubr.f32.gmra.mrb[0].mxu0 %v970
    %v972 = vpop.f32.mrb[0].mxu0
    %v973 = vadd.f32 %v773, %v972
    %v974 = vpop.f32.mrb[0].mxu0
    %975 = vmatprep.mubr.f32.mxu0 0.0
    %v976 = vand.u32 %v123, 4294901760
    %v977 = vsub.f32 %v123, %v976
    %v978 = vand.u32 %v977, 4294901760
    %979 = vmatmul.mubr.f32.gmra.mrb[0].mxu0 %v978
    %v980 = vpop.f32.mrb[0].mxu0
    %v981 = vadd.f32 %v780, %v980
    %v982 = vpop.f32.mrb[0].mxu0
    %983 = vmatprep.mubr.f32.mxu0 0.0
    %v984 = vand.u32 %v124, 4294901760
    %v985 = vsub.f32 %v124, %v984
    %v986 = vand.u32 %v985, 4294901760
    %987 = vmatmul.mubr.f32.gmra.mrb[0].mxu0 %v986
    %v988 = vpop.f32.mrb[0].mxu0
    %v989 = vadd.f32 %v787, %v988
    %v990 = vpop.f32.mrb[0].mxu0
    %991 = vmatprep.mubr.f32.mxu0 0.0
    %v992 = vand.u32 %v125, 4294901760
    %v993 = vsub.f32 %v125, %v992
    %v994 = vand.u32 %v993, 4294901760
    %995 = vmatmul.mubr.f32.gmra.mrb[0].mxu0 %v994
    %v996 = vpop.f32.mrb[0].mxu0
    %v997 = vadd.f32 %v794, %v996
    %v998 = vpop.f32.mrb[0].mxu0
    %999 = vmatprep.mubr.f32.mxu0 0.0
    %v1000 = vand.u32 %v126, 4294901760
    %v1001 = vsub.f32 %v126, %v1000
    %v1002 = vand.u32 %v1001, 4294901760
    %1003 = vmatmul.mubr.f32.gmra.mrb[0].mxu0 %v1002
    %v1004 = vpop.f32.mrb[0].mxu0
    %v1005 = vadd.f32 %v801, %v1004
    %v1006 = vpop.f32.mrb[0].mxu0
    %1007 = vmatprep.mubr.f32.mxu0 0.0
    %v1008 = vand.u32 %v127, 4294901760
    %v1009 = vsub.f32 %v127, %v1008
    %v1010 = vand.u32 %v1009, 4294901760
    %1011 = vmatmul.mubr.f32.gmra.mrb[0].mxu0 %v1010
    %v1012 = vpop.f32.mrb[0].mxu0
    %v1013 = vadd.f32 %v808, %v1012
    %v1014 = vpop.f32.mrb[0].mxu0
    %1015 = vmatprep.mubr.f32.mxu0 0.0
    %v1016 = vand.u32 %v128, 4294901760
    %v1017 = vsub.f32 %v128, %v1016
    %v1018 = vand.u32 %v1017, 4294901760
    %1019 = vmatmul.mubr.f32.gmra.mrb[0].mxu0 %v1018
    %v1020 = vpop.f32.mrb[0].mxu0
    %v1021 = vadd.f32 %v815, %v1020
    %v1022 = vpop.f32.mrb[0].mxu0
    %1023 = vmatprep.mubr.f32.mxu0 0.0
    %v1024 = vand.u32 %v129, 4294901760
    %v1025 = vsub.f32 %v129, %v1024
    %v1026 = vand.u32 %v1025, 4294901760
    %1027 = vmatmul.mubr.f32.gmra.mrb[0].mxu0 %v1026
    %v1028 = vpop.f32.mrb[0].mxu0
    %v1029 = vadd.f32 %v822, %v1028
    %v1030 = vpop.f32.mrb[0].mxu0
    %1031 = vmatprep.mubr.f32.mxu0 0.0
    %v1032 = vand.u32 %v130, 4294901760
    %v1033 = vsub.f32 %v130, %v1032
    %v1034 = vand.u32 %v1033, 4294901760
    %1035 = vmatmul.mubr.f32.gmra.mrb[0].mxu0 %v1034
    %v1036 = vpop.f32.mrb[0].mxu0
    %v1037 = vadd.f32 %v829, %v1036
    %v1038 = vpop.f32.mrb[0].mxu0
    %1039 = vmatprep.mubr.f32.mxu0 0.0
    %v1040 = vand.u32 %v131, 4294901760
    %v1041 = vsub.f32 %v131, %v1040
    %v1042 = vand.u32 %v1041, 4294901760
    %1043 = vmatmul.mubr.f32.gmra.mrb[0].mxu0 %v1042
    %v1044 = vpop.f32.mrb[0].mxu0
    %v1045 = vadd.f32 %v836, %v1044
    %v1046 = vpop.f32.mrb[0].mxu0
    %1047 = vdwg.mxu0
    %1048 = vmatprep.subr.mxu0 0.0
    %v1049 = vand.u32 %v132, 4294901760
    %v1050 = vsub.f32 %v132, %v1049
    %v1051 = vand.u32 %v1050, 4294901760
    %1052 = vmatpush1.msra.mxu0 %v1051
    %1053 = vmatprep.subr.mxu0 0.0
    %v1054 = vand.u32 %v133, 4294901760
    %v1055 = vsub.f32 %v133, %v1054
    %v1056 = vand.u32 %v1055, 4294901760
    %1057 = vmatpush1.msra.mxu0 %v1056
    %1058 = vmatprep.subr.mxu0 0.0
    %v1059 = vand.u32 %v134, 4294901760
    %v1060 = vsub.f32 %v134, %v1059
    %v1061 = vand.u32 %v1060, 4294901760
    %1062 = vmatpush1.msra.mxu0 %v1061
    %1063 = vmatprep.subr.mxu0 0.0
    %v1064 = vand.u32 %v135, 4294901760
    %v1065 = vsub.f32 %v135, %v1064
    %v1066 = vand.u32 %v1065, 4294901760
    %1067 = vmatpush1.msra.mxu0 %v1066
    %1068 = vmatprep.subr.mxu0 0.0
    %v1069 = vand.u32 %v136, 4294901760
    %v1070 = vsub.f32 %v136, %v1069
    %v1071 = vand.u32 %v1070, 4294901760
    %1072 = vmatpush1.msra.mxu0 %v1071
    %1073 = vmatprep.subr.mxu0 0.0
    %v1074 = vand.u32 %v137, 4294901760
    %v1075 = vsub.f32 %v137, %v1074
    %v1076 = vand.u32 %v1075, 4294901760
    %1077 = vmatpush1.msra.mxu0 %v1076
    %1078 = vmatprep.subr.mxu0 0.0
    %v1079 = vand.u32 %v138, 4294901760
    %v1080 = vsub.f32 %v138, %v1079
    %v1081 = vand.u32 %v1080, 4294901760
    %1082 = vmatpush1.msra.mxu0 %v1081
    %1083 = vmatprep.subr.mxu0 0.0
    %v1084 = vand.u32 %v139, 4294901760
    %v1085 = vsub.f32 %v139, %v1084
    %v1086 = vand.u32 %v1085, 4294901760
    %1087 = vmatpush1.msra.mxu0 %v1086
    %1088 = vmatprep.subr.mxu0 0.0
    %v1089 = vand.u32 %v140, 4294901760
    %v1090 = vsub.f32 %v140, %v1089
    %v1091 = vand.u32 %v1090, 4294901760
    %1092 = vmatpush1.msra.mxu0 %v1091
    %1093 = vmatprep.subr.mxu0 0.0
    %v1094 = vand.u32 %v141, 4294901760
    %v1095 = vsub.f32 %v141, %v1094
    %v1096 = vand.u32 %v1095, 4294901760
    %1097 = vmatpush1.msra.mxu0 %v1096
    %1098 = vmatprep.subr.mxu0 0.0
    %v1099 = vand.u32 %v142, 4294901760
    %v1100 = vsub.f32 %v142, %v1099
    %v1101 = vand.u32 %v1100, 4294901760
    %1102 = vmatpush1.msra.mxu0 %v1101
    %1103 = vmatprep.subr.mxu0 0.0
    %v1104 = vand.u32 %v143, 4294901760
    %v1105 = vsub.f32 %v143, %v1104
    %v1106 = vand.u32 %v1105, 4294901760
    %1107 = vmatpush1.msra.mxu0 %v1106
    %1108 = vmatprep.subr.mxu0 0.0
    %v1109 = vand.u32 %v144, 4294901760
    %v1110 = vsub.f32 %v144, %v1109
    %v1111 = vand.u32 %v1110, 4294901760
    %1112 = vmatpush1.msra.mxu0 %v1111
    %1113 = vmatprep.subr.mxu0 0.0
    %v1114 = vand.u32 %v145, 4294901760
    %v1115 = vsub.f32 %v145, %v1114
    %v1116 = vand.u32 %v1115, 4294901760
    %1117 = vmatpush1.msra.mxu0 %v1116
    %1118 = vmatprep.subr.mxu0 0.0
    %v1119 = vand.u32 %v146, 4294901760
    %v1120 = vsub.f32 %v146, %v1119
    %v1121 = vand.u32 %v1120, 4294901760
    %1122 = vmatpush1.msra.mxu0 %v1121
    %1123 = vmatprep.subr.mxu0 0.0
    %v1124 = vand.u32 %v147, 4294901760
    %v1125 = vsub.f32 %v147, %v1124
    %v1126 = vand.u32 %v1125, 4294901760
    %1127 = vmatpush1.msra.mxu0 %v1126
    %1128 = vmatprep.subr.mxu0 0.0
    %1129 = vmatpush1.msra.mxu0 0.0
    %1130 = vmatprep.subr.mxu0 0.0
    %1131 = vmatpush1.msra.mxu0 0.0
    %1132 = vmatprep.subr.mxu0 0.0
    %1133 = vmatpush1.msra.mxu0 0.0
    %1134 = vmatprep.subr.mxu0 0.0
    %1135 = vmatpush1.msra.mxu0 0.0
    %1136 = vmatprep.subr.mxu0 0.0
    %1137 = vmatpush1.msra.mxu0 0.0
    %1138 = vmatprep.subr.mxu0 0.0
    %1139 = vmatpush1.msra.mxu0 0.0
    %1140 = vmatprep.subr.mxu0 0.0
    %1141 = vmatpush1.msra.mxu0 0.0
    %1142 = vmatprep.subr.mxu0 0.0
    %1143 = vmatpush1.msra.mxu0 0.0
    %1144 = vmatprep.subr.mxu0 0.0
    %1145 = vmatpush1.msra.mxu0 0.0
    %1146 = vmatprep.subr.mxu0 0.0
    %1147 = vmatpush1.msra.mxu0 0.0
    %1148 = vmatprep.subr.mxu0 0.0
    %1149 = vmatpush1.msra.mxu0 0.0
    %1150 = vmatprep.subr.mxu0 0.0
    %1151 = vmatpush1.msra.mxu0 0.0
    %1152 = vmatprep.subr.mxu0 0.0
    %1153 = vmatpush1.msra.mxu0 0.0
    %1154 = vmatprep.subr.mxu0 0.0
    %1155 = vmatpush1.msra.mxu0 0.0
    %1156 = vmatprep.subr.mxu0 0.0
    %1157 = vmatpush1.msra.mxu0 0.0
    %1158 = vmatprep.subr.mxu0 0.0
    %1159 = vmatpush1.msra.mxu0 0.0
    %1160 = vmatprep.mubr.f32.mxu0 0.0
    %v1161 = vand.u32 %v116, 4294901760
    %1162 = vmatmul.mubr.f32.gmra.mrb[0].mxu0 %v1161
    %v1163 = vpop.f32.mrb[0].mxu0
    %v1164 = vadd.f32 %v925, %v1163
    %v1165 = vpop.f32.mrb[0].mxu0
    %1166 = vmatprep.mubr.f32.mxu0 0.0
    %v1167 = vand.u32 %v117, 4294901760
    %1168 = vmatmul.mubr.f32.gmra.mrb[0].mxu0 %v1167
    %v1169 = vpop.f32.mrb[0].mxu0
    %v1170 = vadd.f32 %v933, %v1169
    %v1171 = vpop.f32.mrb[0].mxu0
    %1172 = vmatprep.mubr.f32.mxu0 0.0
    %v1173 = vand.u32 %v118, 4294901760
    %1174 = vmatmul.mubr.f32.gmra.mrb[0].mxu0 %v1173
    %v1175 = vpop.f32.mrb[0].mxu0
    %v1176 = vadd.f32 %v941, %v1175
    %v1177 = vpop.f32.mrb[0].mxu0
    %1178 = vmatprep.mubr.f32.mxu0 0.0
    %v1179 = vand.u32 %v119, 4294901760
    %1180 = vmatmul.mubr.f32.gmra.mrb[0].mxu0 %v1179
    %v1181 = vpop.f32.mrb[0].mxu0
    %v1182 = vadd.f32 %v949, %v1181
    %v1183 = vpop.f32.mrb[0].mxu0
    %1184 = vmatprep.mubr.f32.mxu0 0.0
    %v1185 = vand.u32 %v120, 4294901760
    %1186 = vmatmul.mubr.f32.gmra.mrb[0].mxu0 %v1185
    %v1187 = vpop.f32.mrb[0].mxu0
    %v1188 = vadd.f32 %v957, %v1187
    %v1189 = vpop.f32.mrb[0].mxu0
    %1190 = vmatprep.mubr.f32.mxu0 0.0
    %v1191 = vand.u32 %v121, 4294901760
    %1192 = vmatmul.mubr.f32.gmra.mrb[0].mxu0 %v1191
    %v1193 = vpop.f32.mrb[0].mxu0
    %v1194 = vadd.f32 %v965, %v1193
    %v1195 = vpop.f32.mrb[0].mxu0
    %1196 = vmatprep.mubr.f32.mxu0 0.0
    %v1197 = vand.u32 %v122, 4294901760
    %1198 = vmatmul.mubr.f32.gmra.mrb[0].mxu0 %v1197
    %v1199 = vpop.f32.mrb[0].mxu0
    %v1200 = vadd.f32 %v973, %v1199
    %v1201 = vpop.f32.mrb[0].mxu0
    %1202 = vmatprep.mubr.f32.mxu0 0.0
    %v1203 = vand.u32 %v123, 4294901760
    %1204 = vmatmul.mubr.f32.gmra.mrb[0].mxu0 %v1203
    %v1205 = vpop.f32.mrb[0].mxu0
    %v1206 = vadd.f32 %v981, %v1205
    %v1207 = vpop.f32.mrb[0].mxu0
    %1208 = vmatprep.mubr.f32.mxu0 0.0
    %v1209 = vand.u32 %v124, 4294901760
    %1210 = vmatmul.mubr.f32.gmra.mrb[0].mxu0 %v1209
    %v1211 = vpop.f32.mrb[0].mxu0
    %v1212 = vadd.f32 %v989, %v1211
    %v1213 = vpop.f32.mrb[0].mxu0
    %1214 = vmatprep.mubr.f32.mxu0 0.0
    %v1215 = vand.u32 %v125, 4294901760
    %1216 = vmatmul.mubr.f32.gmra.mrb[0].mxu0 %v1215
    %v1217 = vpop.f32.mrb[0].mxu0
    %v1218 = vadd.f32 %v997, %v1217
    %v1219 = vpop.f32.mrb[0].mxu0
    %1220 = vmatprep.mubr.f32.mxu0 0.0
    %v1221 = vand.u32 %v126, 4294901760
    %1222 = vmatmul.mubr.f32.gmra.mrb[0].mxu0 %v1221
    %v1223 = vpop.f32.mrb[0].mxu0
    %v1224 = vadd.f32 %v1005, %v1223
    %v1225 = vpop.f32.mrb[0].mxu0
    %1226 = vmatprep.mubr.f32.mxu0 0.0
    %v1227 = vand.u32 %v127, 4294901760
    %1228 = vmatmul.mubr.f32.gmra.mrb[0].mxu0 %v1227
    %v1229 = vpop.f32.mrb[0].mxu0
    %v1230 = vadd.f32 %v1013, %v1229
    %v1231 = vpop.f32.mrb[0].mxu0
    %1232 = vmatprep.mubr.f32.mxu0 0.0
    %v1233 = vand.u32 %v128, 4294901760
    %1234 = vmatmul.mubr.f32.gmra.mrb[0].mxu0 %v1233
    %v1235 = vpop.f32.mrb[0].mxu0
    %v1236 = vadd.f32 %v1021, %v1235
    %v1237 = vpop.f32.mrb[0].mxu0
    %1238 = vmatprep.mubr.f32.mxu0 0.0
    %v1239 = vand.u32 %v129, 4294901760
    %1240 = vmatmul.mubr.f32.gmra.mrb[0].mxu0 %v1239
    %v1241 = vpop.f32.mrb[0].mxu0
    %v1242 = vadd.f32 %v1029, %v1241
    %v1243 = vpop.f32.mrb[0].mxu0
    %1244 = vmatprep.mubr.f32.mxu0 0.0
    %v1245 = vand.u32 %v130, 4294901760
    %1246 = vmatmul.mubr.f32.gmra.mrb[0].mxu0 %v1245
    %v1247 = vpop.f32.mrb[0].mxu0
    %v1248 = vadd.f32 %v1037, %v1247
    %v1249 = vpop.f32.mrb[0].mxu0
    %1250 = vmatprep.mubr.f32.mxu0 0.0
    %v1251 = vand.u32 %v131, 4294901760
    %1252 = vmatmul.mubr.f32.gmra.mrb[0].mxu0 %v1251
    %v1253 = vpop.f32.mrb[0].mxu0
    %v1254 = vadd.f32 %v1045, %v1253
    %v1255 = vpop.f32.mrb[0].mxu0
    %1256 = vdwg.mxu0
    %1257 = vmatprep.subr.mxu0 0.0
    %v1258 = vand.u32 %v132, 4294901760
    %1259 = vmatpush1.msra.mxu0 %v1258
    %1260 = vmatprep.subr.mxu0 0.0
    %v1261 = vand.u32 %v133, 4294901760
    %1262 = vmatpush1.msra.mxu0 %v1261
    %1263 = vmatprep.subr.mxu0 0.0
    %v1264 = vand.u32 %v134, 4294901760
    %1265 = vmatpush1.msra.mxu0 %v1264
    %1266 = vmatprep.subr.mxu0 0.0
    %v1267 = vand.u32 %v135, 4294901760
    %1268 = vmatpush1.msra.mxu0 %v1267
    %1269 = vmatprep.subr.mxu0 0.0
    %v1270 = vand.u32 %v136, 4294901760
    %1271 = vmatpush1.msra.mxu0 %v1270
    %1272 = vmatprep.subr.mxu0 0.0
    %v1273 = vand.u32 %v137, 4294901760
    %1274 = vmatpush1.msra.mxu0 %v1273
    %1275 = vmatprep.subr.mxu0 0.0
    %v1276 = vand.u32 %v138, 4294901760
    %1277 = vmatpush1.msra.mxu0 %v1276
    %1278 = vmatprep.subr.mxu0 0.0
    %v1279 = vand.u32 %v139, 4294901760
    %1280 = vmatpush1.msra.mxu0 %v1279
    %1281 = vmatprep.subr.mxu0 0.0
    %v1282 = vand.u32 %v140, 4294901760
    %1283 = vmatpush1.msra.mxu0 %v1282
    %1284 = vmatprep.subr.mxu0 0.0
    %v1285 = vand.u32 %v141, 4294901760
    %1286 = vmatpush1.msra.mxu0 %v1285
    %1287 = vmatprep.subr.mxu0 0.0
    %v1288 = vand.u32 %v142, 4294901760
    %1289 = vmatpush1.msra.mxu0 %v1288
    %1290 = vmatprep.subr.mxu0 0.0
    %v1291 = vand.u32 %v143, 4294901760
    %1292 = vmatpush1.msra.mxu0 %v1291
    %1293 = vmatprep.subr.mxu0 0.0
    %v1294 = vand.u32 %v144, 4294901760
    %1295 = vmatpush1.msra.mxu0 %v1294
    %1296 = vmatprep.subr.mxu0 0.0
    %v1297 = vand.u32 %v145, 4294901760
    %1298 = vmatpush1.msra.mxu0 %v1297
    %1299 = vmatprep.subr.mxu0 0.0
    %v1300 = vand.u32 %v146, 4294901760
    %1301 = vmatpush1.msra.mxu0 %v1300
    %1302 = vmatprep.subr.mxu0 0.0
    %v1303 = vand.u32 %v147, 4294901760
    %1304 = vmatpush1.msra.mxu0 %v1303
    %1305 = vmatprep.subr.mxu0 0.0
    %1306 = vmatpush1.msra.mxu0 0.0
    %1307 = vmatprep.subr.mxu0 0.0
    %1308 = vmatpush1.msra.mxu0 0.0
    %1309 = vmatprep.subr.mxu0 0.0
    %1310 = vmatpush1.msra.mxu0 0.0
    %1311 = vmatprep.subr.mxu0 0.0
    %1312 = vmatpush1.msra.mxu0 0.0
    %1313 = vmatprep.subr.mxu0 0.0
    %1314 = vmatpush1.msra.mxu0 0.0
    %1315 = vmatprep.subr.mxu0 0.0
    %1316 = vmatpush1.msra.mxu0 0.0
    %1317 = vmatprep.subr.mxu0 0.0
    %1318 = vmatpush1.msra.mxu0 0.0
    %1319 = vmatprep.subr.mxu0 0.0
    %1320 = vmatpush1.msra.mxu0 0.0
    %1321 = vmatprep.subr.mxu0 0.0
    %1322 = vmatpush1.msra.mxu0 0.0
    %1323 = vmatprep.subr.mxu0 0.0
    %1324 = vmatpush1.msra.mxu0 0.0
    %1325 = vmatprep.subr.mxu0 0.0
    %1326 = vmatpush1.msra.mxu0 0.0
    %1327 = vmatprep.subr.mxu0 0.0
    %1328 = vmatpush1.msra.mxu0 0.0
    %1329 = vmatprep.subr.mxu0 0.0
    %1330 = vmatpush1.msra.mxu0 0.0
    %1331 = vmatprep.subr.mxu0 0.0
    %1332 = vmatpush1.msra.mxu0 0.0
    %1333 = vmatprep.subr.mxu0 0.0
    %1334 = vmatpush1.msra.mxu0 0.0
    %1335 = vmatprep.subr.mxu0 0.0
    %1336 = vmatpush1.msra.mxu0 0.0
    %1337 = vmatprep.mubr.f32.mxu0 0.0
    %v1338 = vand.u32 %v116, 4294901760
    %1339 = vmatmul.mubr.f32.gmra.mrb[0].mxu0 %v1338
    %v1340 = vpop.f32.mrb[0].mxu0
    %v1341 = vadd.f32 %v1164, %v1340
    %v1342 = vpop.f32.mrb[0].mxu0
    %1343 = vmatprep.mubr.f32.mxu0 0.0
    %v1344 = vand.u32 %v117, 4294901760
    %1345 = vmatmul.mubr.f32.gmra.mrb[0].mxu0 %v1344
    %v1346 = vpop.f32.mrb[0].mxu0
    %v1347 = vadd.f32 %v1170, %v1346
    %v1348 = vpop.f32.mrb[0].mxu0
    %1349 = vmatprep.mubr.f32.mxu0 0.0
    %v1350 = vand.u32 %v118, 4294901760
    %1351 = vmatmul.mubr.f32.gmra.mrb[0].mxu0 %v1350
    %v1352 = vpop.f32.mrb[0].mxu0
    %v1353 = vadd.f32 %v1176, %v1352
    %v1354 = vpop.f32.mrb[0].mxu0
    %1355 = vmatprep.mubr.f32.mxu0 0.0
    %v1356 = vand.u32 %v119, 4294901760
    %1357 = vmatmul.mubr.f32.gmra.mrb[0].mxu0 %v1356
    %v1358 = vpop.f32.mrb[0].mxu0
    %v1359 = vadd.f32 %v1182, %v1358
    %v1360 = vpop.f32.mrb[0].mxu0
    %1361 = vmatprep.mubr.f32.mxu0 0.0
    %v1362 = vand.u32 %v120, 4294901760
    %1363 = vmatmul.mubr.f32.gmra.mrb[0].mxu0 %v1362
    %v1364 = vpop.f32.mrb[0].mxu0
    %v1365 = vadd.f32 %v1188, %v1364
    %v1366 = vpop.f32.mrb[0].mxu0
    %1367 = vmatprep.mubr.f32.mxu0 0.0
    %v1368 = vand.u32 %v121, 4294901760
    %1369 = vmatmul.mubr.f32.gmra.mrb[0].mxu0 %v1368
    %v1370 = vpop.f32.mrb[0].mxu0
    %v1371 = vadd.f32 %v1194, %v1370
    %v1372 = vpop.f32.mrb[0].mxu0
    %1373 = vmatprep.mubr.f32.mxu0 0.0
    %v1374 = vand.u32 %v122, 4294901760
    %1375 = vmatmul.mubr.f32.gmra.mrb[0].mxu0 %v1374
    %v1376 = vpop.f32.mrb[0].mxu0
    %v1377 = vadd.f32 %v1200, %v1376
    %v1378 = vpop.f32.mrb[0].mxu0
    %1379 = vmatprep.mubr.f32.mxu0 0.0
    %v1380 = vand.u32 %v123, 4294901760
    %1381 = vmatmul.mubr.f32.gmra.mrb[0].mxu0 %v1380
    %v1382 = vpop.f32.mrb[0].mxu0
    %v1383 = vadd.f32 %v1206, %v1382
    %v1384 = vpop.f32.mrb[0].mxu0
    %1385 = vmatprep.mubr.f32.mxu0 0.0
    %v1386 = vand.u32 %v124, 4294901760
    %1387 = vmatmul.mubr.f32.gmra.mrb[0].mxu0 %v1386
    %v1388 = vpop.f32.mrb[0].mxu0
    %v1389 = vadd.f32 %v1212, %v1388
    %v1390 = vpop.f32.mrb[0].mxu0
    %1391 = vmatprep.mubr.f32.mxu0 0.0
    %v1392 = vand.u32 %v125, 4294901760
    %1393 = vmatmul.mubr.f32.gmra.mrb[0].mxu0 %v1392
    %v1394 = vpop.f32.mrb[0].mxu0
    %v1395 = vadd.f32 %v1218, %v1394
    %v1396 = vpop.f32.mrb[0].mxu0
    %1397 = vmatprep.mubr.f32.mxu0 0.0
    %v1398 = vand.u32 %v126, 4294901760
    %1399 = vmatmul.mubr.f32.gmra.mrb[0].mxu0 %v1398
    %v1400 = vpop.f32.mrb[0].mxu0
    %v1401 = vadd.f32 %v1224, %v1400
    %v1402 = vpop.f32.mrb[0].mxu0
    %1403 = vmatprep.mubr.f32.mxu0 0.0
    %v1404 = vand.u32 %v127, 4294901760
    %1405 = vmatmul.mubr.f32.gmra.mrb[0].mxu0 %v1404
    %v1406 = vpop.f32.mrb[0].mxu0
    %v1407 = vadd.f32 %v1230, %v1406
    %v1408 = vpop.f32.mrb[0].mxu0
    %1409 = vmatprep.mubr.f32.mxu0 0.0
    %v1410 = vand.u32 %v128, 4294901760
    %1411 = vmatmul.mubr.f32.gmra.mrb[0].mxu0 %v1410
    %v1412 = vpop.f32.mrb[0].mxu0
    %v1413 = vadd.f32 %v1236, %v1412
    %v1414 = vpop.f32.mrb[0].mxu0
    %1415 = vmatprep.mubr.f32.mxu0 0.0
    %v1416 = vand.u32 %v129, 4294901760
    %1417 = vmatmul.mubr.f32.gmra.mrb[0].mxu0 %v1416
    %v1418 = vpop.f32.mrb[0].mxu0
    %v1419 = vadd.f32 %v1242, %v1418
    %v1420 = vpop.f32.mrb[0].mxu0
    %1421 = vmatprep.mubr.f32.mxu0 0.0
    %v1422 = vand.u32 %v130, 4294901760
    %1423 = vmatmul.mubr.f32.gmra.mrb[0].mxu0 %v1422
    %v1424 = vpop.f32.mrb[0].mxu0
    %v1425 = vadd.f32 %v1248, %v1424
    %v1426 = vpop.f32.mrb[0].mxu0
    %1427 = vmatprep.mubr.f32.mxu0 0.0
    %v1428 = vand.u32 %v131, 4294901760
    %1429 = vmatmul.mubr.f32.gmra.mrb[0].mxu0 %v1428
    %v1430 = vpop.f32.mrb[0].mxu0
    %v1431 = vadd.f32 %v1254, %v1430
    %v1432 = vpop.f32.mrb[0].mxu0
    %1433 = vdwg.mxu0
    %1434 = vst [vmem:[#allocation2] sm:$0xff] %v1341
    %1435 = vst [vmem:[#allocation2 + $0x8] sm:$0xff] %v1347
    %1436 = vst [vmem:[#allocation2 + $0x10] sm:$0xff] %v1353
    %1437 = vst [vmem:[#allocation2 + $0x18] sm:$0xff] %v1359
    %1438 = vst [vmem:[#allocation2 + $0x20] sm:$0xff] %v1365
    %1439 = vst [vmem:[#allocation2 + $0x28] sm:$0xff] %v1371
    %1440 = vst [vmem:[#allocation2 + $0x30] sm:$0xff] %v1377
    %1441 = vst [vmem:[#allocation2 + $0x38] sm:$0xff] %v1383
    %1442 = vst [vmem:[#allocation2 + $0x40] sm:$0xff] %v1389
    %1443 = vst [vmem:[#allocation2 + $0x48] sm:$0xff] %v1395
    %1444 = vst [vmem:[#allocation2 + $0x50] sm:$0xff] %v1401
    %1445 = vst [vmem:[#allocation2 + $0x58] sm:$0xff] %v1407
    %1446 = vst [vmem:[#allocation2 + $0x60] sm:$0xff] %v1413
    %1447 = vst [vmem:[#allocation2 + $0x68] sm:$0xff] %v1419
    %1448 = vst [vmem:[#allocation2 + $0x70] sm:$0xff] %v1425
    %1449 = vst [vmem:[#allocation2 + $0x78] sm:$0xff] %v1431
    %1450 = vmax.xlane.f32.xlu0 %v1341
    %v1451 = vpop.xlane.xlu0 %1450
    %1452 = vmax.xlane.f32.xlu0 %v1347
    %v1453 = vpop.xlane.xlu0 %1452
    %1454 = vmax.xlane.f32.xlu0 %v1353
    %v1455 = vpop.xlane.xlu0 %1454
    %1456 = vmax.xlane.f32.xlu0 %v1359
    %v1457 = vpop.xlane.xlu0 %1456
    %1458 = vmax.xlane.f32.xlu0 %v1365
    %v1459 = vpop.xlane.xlu0 %1458
    %1460 = vmax.xlane.f32.xlu0 %v1371
    %v1461 = vpop.xlane.xlu0 %1460
    %1462 = vmax.xlane.f32.xlu0 %v1377
    %v1463 = vpop.xlane.xlu0 %1462
    %1464 = vmax.xlane.f32.xlu0 %v1383
    %v1465 = vpop.xlane.xlu0 %1464
    %1466 = vmax.xlane.f32.xlu0 %v1389
    %v1467 = vpop.xlane.xlu0 %1466
    %1468 = vmax.xlane.f32.xlu0 %v1395
    %v1469 = vpop.xlane.xlu0 %1468
    %1470 = vmax.xlane.f32.xlu0 %v1401
    %v1471 = vpop.xlane.xlu0 %1470
    %1472 = vmax.xlane.f32.xlu0 %v1407
    %v1473 = vpop.xlane.xlu0 %1472
    %1474 = vmax.xlane.f32.xlu0 %v1413
    %v1475 = vpop.xlane.xlu0 %1474
    %1476 = vmax.xlane.f32.xlu0 %v1419
    %v1477 = vpop.xlane.xlu0 %1476
    %1478 = vmax.xlane.f32.xlu0 %v1425
    %v1479 = vpop.xlane.xlu0 %1478
    %1480 = vmax.xlane.f32.xlu0 %v1431
    %v1481 = vpop.xlane.xlu0 %1480
    %v1482 = vsub.f32 %v1341, %v1451
    %v1483 = vsub.f32 %v1347, %v1453
    %v1484 = vsub.f32 %v1353, %v1455
    %v1485 = vsub.f32 %v1359, %v1457
    %v1486 = vsub.f32 %v1365, %v1459
    %v1487 = vsub.f32 %v1371, %v1461
    %v1488 = vsub.f32 %v1377, %v1463
    %v1489 = vsub.f32 %v1383, %v1465
    %v1490 = vsub.f32 %v1389, %v1467
    %v1491 = vsub.f32 %v1395, %v1469
    %v1492 = vsub.f32 %v1401, %v1471
    %v1493 = vsub.f32 %v1407, %v1473
    %v1494 = vsub.f32 %v1413, %v1475
    %v1495 = vsub.f32 %v1419, %v1477
    %v1496 = vsub.f32 %v1425, %v1479
    %v1497 = vsub.f32 %v1431, %v1481
    %v1498 = vmul.f32 %v1482, 1.442695
    %v1499 = vpow.pop %v1498
    %v1500 = vmul.f32 %v1483, 1.442695
    %v1501 = vpow.pop %v1500
    %v1502 = vmul.f32 %v1484, 1.442695
    %v1503 = vpow.pop %v1502
    %v1504 = vmul.f32 %v1485, 1.442695
    %v1505 = vpow.pop %v1504
    %v1506 = vmul.f32 %v1486, 1.442695
    %v1507 = vpow.pop %v1506
    %v1508 = vmul.f32 %v1487, 1.442695
    %v1509 = vpow.pop %v1508
    %v1510 = vmul.f32 %v1488, 1.442695
    %v1511 = vpow.pop %v1510
    %v1512 = vmul.f32 %v1489, 1.442695
    %v1513 = vpow.pop %v1512
    %v1514 = vmul.f32 %v1490, 1.442695
    %v1515 = vpow.pop %v1514
    %v1516 = vmul.f32 %v1491, 1.442695
    %v1517 = vpow.pop %v1516
    %v1518 = vmul.f32 %v1492, 1.442695
    %v1519 = vpow.pop %v1518
    %v1520 = vmul.f32 %v1493, 1.442695
    %v1521 = vpow.pop %v1520
    %v1522 = vmul.f32 %v1494, 1.442695
    %v1523 = vpow.pop %v1522
    %v1524 = vmul.f32 %v1495, 1.442695
    %v1525 = vpow.pop %v1524
    %v1526 = vmul.f32 %v1496, 1.442695
    %v1527 = vpow.pop %v1526
    %v1528 = vmul.f32 %v1497, 1.442695
    %v1529 = vpow.pop %v1528
    %1530 = vadd.xlane.f32.xlu0 %v1499
    %v1531 = vpop.xlane.xlu0 %1530
    %1532 = vadd.xlane.f32.xlu0 %v1501
    %v1533 = vpop.xlane.xlu0 %1532
    %1534 = vadd.xlane.f32.xlu0 %v1503
    %v1535 = vpop.xlane.xlu0 %1534
    %1536 = vadd.xlane.f32.xlu0 %v1505
    %v1537 = vpop.xlane.xlu0 %1536
    %1538 = vadd.xlane.f32.xlu0 %v1507
    %v1539 = vpop.xlane.xlu0 %1538
    %1540 = vadd.xlane.f32.xlu0 %v1509
    %v1541 = vpop.xlane.xlu0 %1540
    %1542 = vadd.xlane.f32.xlu0 %v1511
    %v1543 = vpop.xlane.xlu0 %1542
    %1544 = vadd.xlane.f32.xlu0 %v1513
    %v1545 = vpop.xlane.xlu0 %1544
    %1546 = vadd.xlane.f32.xlu0 %v1515
    %v1547 = vpop.xlane.xlu0 %1546
    %1548 = vadd.xlane.f32.xlu0 %v1517
    %v1549 = vpop.xlane.xlu0 %1548
    %1550 = vadd.xlane.f32.xlu0 %v1519
    %v1551 = vpop.xlane.xlu0 %1550
    %1552 = vadd.xlane.f32.xlu0 %v1521
    %v1553 = vpop.xlane.xlu0 %1552
    %1554 = vadd.xlane.f32.xlu0 %v1523
    %v1555 = vpop.xlane.xlu0 %1554
    %1556 = vadd.xlane.f32.xlu0 %v1525
    %v1557 = vpop.xlane.xlu0 %1556
    %1558 = vadd.xlane.f32.xlu0 %v1527
    %v1559 = vpop.xlane.xlu0 %1558
    %1560 = vadd.xlane.f32.xlu0 %v1529
    %v1561 = vpop.xlane.xlu0 %1560
    %v1562 = vlog2.pop %v1531
    %v1563 = vmul.f32 %v1562, 0.6931472
    %v1564 = vlog2.pop %v1533
    %v1565 = vmul.f32 %v1564, 0.6931472
    %v1566 = vlog2.pop %v1535
    %v1567 = vmul.f32 %v1566, 0.6931472
    %v1568 = vlog2.pop %v1537
    %v1569 = vmul.f32 %v1568, 0.6931472
    %v1570 = vlog2.pop %v1539
    %v1571 = vmul.f32 %v1570, 0.6931472
    %v1572 = vlog2.pop %v1541
    %v1573 = vmul.f32 %v1572, 0.6931472
    %v1574 = vlog2.pop %v1543
    %v1575 = vmul.f32 %v1574, 0.6931472
    %v1576 = vlog2.pop %v1545
    %v1577 = vmul.f32 %v1576, 0.6931472
    %v1578 = vlog2.pop %v1547
    %v1579 = vmul.f32 %v1578, 0.6931472
    %v1580 = vlog2.pop %v1549
    %v1581 = vmul.f32 %v1580, 0.6931472
    %v1582 = vlog2.pop %v1551
    %v1583 = vmul.f32 %v1582, 0.6931472
    %v1584 = vlog2.pop %v1553
    %v1585 = vmul.f32 %v1584, 0.6931472
    %v1586 = vlog2.pop %v1555
    %v1587 = vmul.f32 %v1586, 0.6931472
    %v1588 = vlog2.pop %v1557
    %v1589 = vmul.f32 %v1588, 0.6931472
    %v1590 = vlog2.pop %v1559
    %v1591 = vmul.f32 %v1590, 0.6931472
    %v1592 = vlog2.pop %v1561
    %v1593 = vmul.f32 %v1592, 0.6931472
    %v1594 = vadd.f32 %v1563, %v1451
    %v1595 = vadd.f32 %v1565, %v1453
    %v1596 = vadd.f32 %v1567, %v1455
    %v1597 = vadd.f32 %v1569, %v1457
    %v1598 = vadd.f32 %v1571, %v1459
    %v1599 = vadd.f32 %v1573, %v1461
    %v1600 = vadd.f32 %v1575, %v1463
    %v1601 = vadd.f32 %v1577, %v1465
    %v1602 = vadd.f32 %v1579, %v1467
    %v1603 = vadd.f32 %v1581, %v1469
    %v1604 = vadd.f32 %v1583, %v1471
    %v1605 = vadd.f32 %v1585, %v1473
    %v1606 = vadd.f32 %v1587, %v1475
    %v1607 = vadd.f32 %v1589, %v1477
    %v1608 = vadd.f32 %v1591, %v1479
    %v1609 = vadd.f32 %v1593, %v1481
    %v1610 = vld [vmem:[%s1] sm:$0xff]
    %v1611 = vld [vmem:[%s1 + $0x8] sm:$0xff]
    %v1612 = vld [vmem:[%s1 + $0x10] sm:$0xff]
    %v1613 = vld [vmem:[%s1 + $0x18] sm:$0xff]
    %v1614 = vld [vmem:[%s1 + $0x20] sm:$0xff]
    %v1615 = vld [vmem:[%s1 + $0x28] sm:$0xff]
    %v1616 = vld [vmem:[%s1 + $0x30] sm:$0xff]
    %v1617 = vld [vmem:[%s1 + $0x38] sm:$0xff]
    %v1618 = vld [vmem:[%s1 + $0x40] sm:$0xff]
    %v1619 = vld [vmem:[%s1 + $0x48] sm:$0xff]
    %v1620 = vld [vmem:[%s1 + $0x50] sm:$0xff]
    %v1621 = vld [vmem:[%s1 + $0x58] sm:$0xff]
    %v1622 = vld [vmem:[%s1 + $0x60] sm:$0xff]
    %v1623 = vld [vmem:[%s1 + $0x68] sm:$0xff]
    %v1624 = vld [vmem:[%s1 + $0x70] sm:$0xff]
    %v1625 = vld [vmem:[%s1 + $0x78] sm:$0xff]
    %1626 = vset.pattern.permute.xlu0 0
    %1627 = vperm.xlu0 %1626, %v1610
    %v1628 = vpop.permute.xlu0 %1627
    %1629 = vset.pattern.permute.xlu0 0
    %1630 = vperm.xlu0 %1629, %v1611
    %v1631 = vpop.permute.xlu0 %1630
    %1632 = vset.pattern.permute.xlu0 0
    %1633 = vperm.xlu0 %1632, %v1612
    %v1634 = vpop.permute.xlu0 %1633
    %1635 = vset.pattern.permute.xlu0 0
    %1636 = vperm.xlu0 %1635, %v1613
    %v1637 = vpop.permute.xlu0 %1636
    %1638 = vset.pattern.permute.xlu0 0
    %1639 = vperm.xlu0 %1638, %v1614
    %v1640 = vpop.permute.xlu0 %1639
    %1641 = vset.pattern.permute.xlu0 0
    %1642 = vperm.xlu0 %1641, %v1615
    %v1643 = vpop.permute.xlu0 %1642
    %1644 = vset.pattern.permute.xlu0 0
    %1645 = vperm.xlu0 %1644, %v1616
    %v1646 = vpop.permute.xlu0 %1645
    %1647 = vset.pattern.permute.xlu0 0
    %1648 = vperm.xlu0 %1647, %v1617
    %v1649 = vpop.permute.xlu0 %1648
    %1650 = vset.pattern.permute.xlu0 0
    %1651 = vperm.xlu0 %1650, %v1618
    %v1652 = vpop.permute.xlu0 %1651
    %1653 = vset.pattern.permute.xlu0 0
    %1654 = vperm.xlu0 %1653, %v1619
    %v1655 = vpop.permute.xlu0 %1654
    %1656 = vset.pattern.permute.xlu0 0
    %1657 = vperm.xlu0 %1656, %v1620
    %v1658 = vpop.permute.xlu0 %1657
    %1659 = vset.pattern.permute.xlu0 0
    %1660 = vperm.xlu0 %1659, %v1621
    %v1661 = vpop.permute.xlu0 %1660
    %1662 = vset.pattern.permute.xlu0 0
    %1663 = vperm.xlu0 %1662, %v1622
    %v1664 = vpop.permute.xlu0 %1663
    %1665 = vset.pattern.permute.xlu0 0
    %1666 = vperm.xlu0 %1665, %v1623
    %v1667 = vpop.permute.xlu0 %1666
    %1668 = vset.pattern.permute.xlu0 0
    %1669 = vperm.xlu0 %1668, %v1624
    %v1670 = vpop.permute.xlu0 %1669
    %1671 = vset.pattern.permute.xlu0 0
    %1672 = vperm.xlu0 %1671, %v1625
    %v1673 = vpop.permute.xlu0 %1672
    %vm1674 = vcmp.eq.s32.totalorder %v19, %v1628
    %vm1675 = vcmp.eq.s32.totalorder %v19, %v1631
    %vm1676 = vcmp.eq.s32.totalorder %v19, %v1634
    %vm1677 = vcmp.eq.s32.totalorder %v19, %v1637
    %vm1678 = vcmp.eq.s32.totalorder %v19, %v1640
    %vm1679 = vcmp.eq.s32.totalorder %v19, %v1643
    %vm1680 = vcmp.eq.s32.totalorder %v19, %v1646
    %vm1681 = vcmp.eq.s32.totalorder %v19, %v1649
    %vm1682 = vcmp.eq.s32.totalorder %v19, %v1652
    %vm1683 = vcmp.eq.s32.totalorder %v19, %v1655
    %vm1684 = vcmp.eq.s32.totalorder %v19, %v1658
    %vm1685 = vcmp.eq.s32.totalorder %v19, %v1661
    %vm1686 = vcmp.eq.s32.totalorder %v19, %v1664
    %vm1687 = vcmp.eq.s32.totalorder %v19, %v1667
    %vm1688 = vcmp.eq.s32.totalorder %v19, %v1670
    %vm1689 = vcmp.eq.s32.totalorder %v19, %v1673
    %v1690 = vsel %vm1674, %v1341, 0.0
    %v1691 = vsel %vm1675, %v1347, 0.0
    %v1692 = vsel %vm1676, %v1353, 0.0
    %v1693 = vsel %vm1677, %v1359, 0.0
    %v1694 = vsel %vm1678, %v1365, 0.0
    %v1695 = vsel %vm1679, %v1371, 0.0
    %v1696 = vsel %vm1680, %v1377, 0.0
    %v1697 = vsel %vm1681, %v1383, 0.0
    %v1698 = vsel %vm1682, %v1389, 0.0
    %v1699 = vsel %vm1683, %v1395, 0.0
    %v1700 = vsel %vm1684, %v1401, 0.0
    %v1701 = vsel %vm1685, %v1407, 0.0
    %v1702 = vsel %vm1686, %v1413, 0.0
    %v1703 = vsel %vm1687, %v1419, 0.0
    %v1704 = vsel %vm1688, %v1425, 0.0
    %v1705 = vsel %vm1689, %v1431, 0.0
    %1706 = vadd.xlane.f32.xlu0 %v1690
    %v1707 = vpop.xlane.xlu0 %1706
    %1708 = vadd.xlane.f32.xlu0 %v1691
    %v1709 = vpop.xlane.xlu0 %1708
    %1710 = vadd.xlane.f32.xlu0 %v1692
    %v1711 = vpop.xlane.xlu0 %1710
    %1712 = vadd.xlane.f32.xlu0 %v1693
    %v1713 = vpop.xlane.xlu0 %1712
    %1714 = vadd.xlane.f32.xlu0 %v1694
    %v1715 = vpop.xlane.xlu0 %1714
    %1716 = vadd.xlane.f32.xlu0 %v1695
    %v1717 = vpop.xlane.xlu0 %1716
    %1718 = vadd.xlane.f32.xlu0 %v1696
    %v1719 = vpop.xlane.xlu0 %1718
    %1720 = vadd.xlane.f32.xlu0 %v1697
    %v1721 = vpop.xlane.xlu0 %1720
    %1722 = vadd.xlane.f32.xlu0 %v1698
    %v1723 = vpop.xlane.xlu0 %1722
    %1724 = vadd.xlane.f32.xlu0 %v1699
    %v1725 = vpop.xlane.xlu0 %1724
    %1726 = vadd.xlane.f32.xlu0 %v1700
    %v1727 = vpop.xlane.xlu0 %1726
    %1728 = vadd.xlane.f32.xlu0 %v1701
    %v1729 = vpop.xlane.xlu0 %1728
    %1730 = vadd.xlane.f32.xlu0 %v1702
    %v1731 = vpop.xlane.xlu0 %1730
    %1732 = vadd.xlane.f32.xlu0 %v1703
    %v1733 = vpop.xlane.xlu0 %1732
    %1734 = vadd.xlane.f32.xlu0 %v1704
    %v1735 = vpop.xlane.xlu0 %1734
    %1736 = vadd.xlane.f32.xlu0 %v1705
    %v1737 = vpop.xlane.xlu0 %1736
    %v1738 = vlaneseq
    %v1739 = vshrl.u32 %v1738, 7
    %v1740 = vadd.s32 %v1739, 8
    %v1741 = vadd.s32 %v1739, 16
    %v1742 = vadd.s32 %v1739, 24
    %v1743 = vadd.s32 %v1739, 32
    %v1744 = vadd.s32 %v1739, 40
    %v1745 = vadd.s32 %v1739, 48
    %v1746 = vadd.s32 %v1739, 56
    %v1747 = vadd.s32 %v1739, 64
    %v1748 = vadd.s32 %v1739, 72
    %v1749 = vadd.s32 %v1739, 80
    %v1750 = vadd.s32 %v1739, 88
    %v1751 = vadd.s32 %v1739, 96
    %v1752 = vadd.s32 %v1739, 104
    %v1753 = vadd.s32 %v1739, 112
    %v1754 = vadd.s32 %v1739, 120
    %s1755 = smul.u32 0, 128
    %v1756 = vstv %s1755
    %v1757 = vadd.s32 %v1739, %v1756
    %v1758 = vadd.s32 %v1740, %v1756
    %v1759 = vadd.s32 %v1741, %v1756
    %v1760 = vadd.s32 %v1742, %v1756
    %v1761 = vadd.s32 %v1743, %v1756
    %v1762 = vadd.s32 %v1744, %v1756
    %v1763 = vadd.s32 %v1745, %v1756
    %v1764 = vadd.s32 %v1746, %v1756
    %v1765 = vadd.s32 %v1747, %v1756
    %v1766 = vadd.s32 %v1748, %v1756
    %v1767 = vadd.s32 %v1749, %v1756
    %v1768 = vadd.s32 %v1750, %v1756
    %v1769 = vadd.s32 %v1751, %v1756
    %v1770 = vadd.s32 %v1752, %v1756
    %v1771 = vadd.s32 %v1753, %v1756
    %v1772 = vadd.s32 %v1754, %v1756
    %vm1773 = vcmp.lt.s32.totalorder %v1757, 16
    %vm1774 = vcmp.lt.s32.totalorder %v1758, 16
    %vm1775 = vcmp.lt.s32.totalorder %v1759, 16
    %vm1776 = vcmp.lt.s32.totalorder %v1760, 16
    %vm1777 = vcmp.lt.s32.totalorder %v1761, 16
    %vm1778 = vcmp.lt.s32.totalorder %v1762, 16
    %vm1779 = vcmp.lt.s32.totalorder %v1763, 16
    %vm1780 = vcmp.lt.s32.totalorder %v1764, 16
    %vm1781 = vcmp.lt.s32.totalorder %v1765, 16
    %vm1782 = vcmp.lt.s32.totalorder %v1766, 16
    %vm1783 = vcmp.lt.s32.totalorder %v1767, 16
    %vm1784 = vcmp.lt.s32.totalorder %v1768, 16
    %vm1785 = vcmp.lt.s32.totalorder %v1769, 16
    %vm1786 = vcmp.lt.s32.totalorder %v1770, 16
    %vm1787 = vcmp.lt.s32.totalorder %v1771, 16
    %vm1788 = vcmp.lt.s32.totalorder %v1772, 16
    %v1789 = vsub.f32 %v1594, %v1707
    %v1790 = vsub.f32 %v1595, %v1709
    %v1791 = vsub.f32 %v1596, %v1711
    %v1792 = vsub.f32 %v1597, %v1713
    %v1793 = vsub.f32 %v1598, %v1715
    %v1794 = vsub.f32 %v1599, %v1717
    %v1795 = vsub.f32 %v1600, %v1719
    %v1796 = vsub.f32 %v1601, %v1721
    %v1797 = vsub.f32 %v1602, %v1723
    %v1798 = vsub.f32 %v1603, %v1725
    %v1799 = vsub.f32 %v1604, %v1727
    %v1800 = vsub.f32 %v1605, %v1729
    %v1801 = vsub.f32 %v1606, %v1731
    %v1802 = vsub.f32 %v1607, %v1733
    %v1803 = vsub.f32 %v1608, %v1735
    %v1804 = vsub.f32 %v1609, %v1737
    %v1805 = vsel %vm1773, %v1789, 0.0
    %v1806 = vsel %vm1774, %v1790, 0.0
    %v1807 = vsel %vm1775, %v1791, 0.0
    %v1808 = vsel %vm1776, %v1792, 0.0
    %v1809 = vsel %vm1777, %v1793, 0.0
    %v1810 = vsel %vm1778, %v1794, 0.0
    %v1811 = vsel %vm1779, %v1795, 0.0
    %v1812 = vsel %vm1780, %v1796, 0.0
    %v1813 = vsel %vm1781, %v1797, 0.0
    %v1814 = vsel %vm1782, %v1798, 0.0
    %v1815 = vsel %vm1783, %v1799, 0.0
    %v1816 = vsel %vm1784, %v1800, 0.0
    %v1817 = vsel %vm1785, %v1801, 0.0
    %v1818 = vsel %vm1786, %v1802, 0.0
    %v1819 = vsel %vm1787, %v1803, 0.0
    %v1820 = vsel %vm1788, %v1804, 0.0
    %v1821 = vadd.f32 %v1805, %v1806
    %v1822 = vadd.f32 %v1821, %v1807
    %v1823 = vadd.f32 %v1822, %v1808
    %v1824 = vadd.f32 %v1823, %v1809
    %v1825 = vadd.f32 %v1824, %v1810
    %v1826 = vadd.f32 %v1825, %v1811
    %v1827 = vadd.f32 %v1826, %v1812
    %v1828 = vadd.f32 %v1827, %v1813
    %v1829 = vadd.f32 %v1828, %v1814
    %v1830 = vadd.f32 %v1829, %v1815
    %v1831 = vadd.f32 %v1830, %v1816
    %v1832 = vadd.f32 %v1831, %v1817
    %v1833 = vadd.f32 %v1832, %v1818
    %v1834 = vadd.f32 %v1833, %v1819
    %v1835 = vadd.f32 %v1834, %v1820
    %v1836 = vrot.slane %v1835, 4
    %v1837 = vadd.f32 %v1835, %v1836
    %v1838 = vrot.slane %v1837, 2
    %v1839 = vadd.f32 %v1837, %v1838
    %v1840 = vrot.slane %v1839, 1
    %v1841 = vadd.f32 %v1839, %v1840
    %vm1842 = vcmask 0
    %1843 = vst.msk [vmem:[#allocation4] sm:$0x1] %vm1842, %v1841
    // Predicated region
    $region14: #{tpu_custom_call.1} parent=1 // pred_check
      _
    $region15: #{tpu_custom_call.1} parent=1 // pred_check_branch
      %1845 = sbr.rel (0) target = $region17
    $region16: #{tpu_custom_call.1} parent=1 // pred_region
      %s1847 = ssub.s32 2048, 2048
      %1848 = vsyncadd [#allocation3], %s1847
      %s1849 = sshll.u32 [#allocation2], 4
      %s1850 = int_to_ptr.vmem [resolvable:$true] %s1849
      %1855 = dma.vmem_to_hbm [thread:$0]  %s1850, 2048, %s3, [#allocation3], 128, 128, 8
    $region17: #{tpu_custom_call.1} parent=1 // pred_fallthru
      _
    // Predicated region
    $region18: #{tpu_custom_call.1} parent=1 // pred_check
      _
    $region19: #{tpu_custom_call.1} parent=1 // pred_check_branch
      %1857 = sbr.rel (0) target = $region21
    $region20: #{tpu_custom_call.1} parent=1 // pred_region
      %s1859 = ssub.s32 16, 16
      %1860 = vsyncadd [#allocation5], %s1859
      %s1862 = sshll.u32 [#allocation4], 4
      %s1863 = int_to_ptr.vmem [resolvable:$true] %s1862
      %1865 = dma.vmem_to_hbm [thread:$0]  %s1863, 16, %s4, [#allocation5]
    $region21: #{tpu_custom_call.1} parent=1 // pred_fallthru
      _
    // Predicated region
    $region22: #{tpu_custom_call.1} parent=1 // pred_check
      _
    $region23: #{tpu_custom_call.1} parent=1 // pred_check_branch
      %1867 = sbr.rel (0) target = $region25
    $region24: #{tpu_custom_call.1} parent=1 // pred_region
      %1868 = dma.done [#allocation3], 2048
    $region25: #{tpu_custom_call.1} parent=1 // pred_fallthru
      _
    // Predicated region
    $region26: #{tpu_custom_call.1} parent=1 // pred_check
      _
    $region27: #{tpu_custom_call.1} parent=1 // pred_check_branch
      %1870 = sbr.rel (0) target = $region29
    $region28: #{tpu_custom_call.1} parent=1 // pred_region
      %1871 = dma.done [#allocation5], 16
    $region29: #{tpu_custom_call.1} parent=1 // pred_fallthru
      _
    %1872 = vsyncpa [#allocation3], 1
    %1873 = vsyncpa [#allocation5], 1

</llo_original>
